<compile_context>
chip_gen: v6e
topology: v6e:2x2x1
jax: 0.10.0
libtpu: 0.0.40
codegen_flags: <defaults>
</compile_context>

<pallas_src>
import functools
import math

import jax
import jax.numpy as jnp
from jax.experimental import pallas as pl
from jax.experimental.pallas import tpu as pltpu

# ----------------------------------------------------------------------------
# Scaled-down config (real bert-base-multilingual-cased: hidden=768, 12 layers,
# 12 heads, vocab~119k). Shapes are small but shape/axis semantics match.
# ----------------------------------------------------------------------------
VOCAB = 100
HIDDEN = 128
N_LAYERS = 2
N_HEADS = 2
HEAD_DIM = HIDDEN // N_HEADS
HP = 128                      # per-head padded (lane-dense) Q/K/V width
FFN = 256
MAX_POS = 32
TYPE_VOCAB = 2
LN_EPS = 1e-12
QA_PAD = 128                  # lane-dense padding for the 2-wide qa head
SUBLANE_BF16 = 16             # bf16 sublane tile: pad token axis to this
VMEM_LIMIT = 32 * 1024 * 1024  # explicit budget; far under v7x's 64 MiB/TC


# ----------------------------------------------------------------------------
# Fused encoder-layer kernel
# ----------------------------------------------------------------------------
def _layer_norm_f32(y, g, b):
    mu = jnp.mean(y, axis=-1, keepdims=True)
    yc = y - mu
    var = jnp.mean(yc * yc, axis=-1, keepdims=True)
    return yc * jax.lax.rsqrt(var + LN_EPS) * g + b


def _encoder_layer_kernel(*refs, with_input_ln, with_qa):
    """One grid step = one batch: full transformer layer on an (SP, H) tile.

    Inputs (in order): x, bias, [emb_ln_g, emb_ln_b], wqkv, bqkv, wo, bo,
    ln1_g, ln1_b, w1, b1, w2, b2, ln2_g, ln2_b, [qa_w, qa_b]
    Outputs: hidden_out, [qa_out]
    """
    refs = list(refs)
    x_ref, bias_ref = refs[0], refs[1]
    i = 2
    if with_input_ln:
        iln_g, iln_b = refs[i], refs[i + 1]
        i += 2
    (wqkv, bqkv, wo, bo, ln1_g, ln1_b,
     w1, b1, w2, b2, ln2_g, ln2_b) = refs[i:i + 12]
    i += 12
    if with_qa:
        qa_w, qa_b = refs[i], refs[i + 1]
        i += 2
    o_ref = refs[i]
    i += 1
    if with_qa:
        qa_ref = refs[i]

    # --- (layer 0 only) embedding LayerNorm fused here -----------------------
    if with_input_ln:
        x32 = _layer_norm_f32(x_ref[...].astype(jnp.float32),
                              iln_g[...], iln_b[...])
        x_bf = x32.astype(jnp.bfloat16)
        x_res = x32
    else:
        x_bf = x_ref[...]
        x_res = x_bf.astype(jnp.float32)

    bias = bias_ref[0]                                   # (1, SP) additive mask

    # --- fused QKV projection; each head's Q/K/V slab is 128-lane aligned ----
    qkv = (jnp.dot(x_bf, wqkv[...], preferred_element_type=jnp.float32)
           + bqkv[...]).astype(jnp.bfloat16)             # (SP, NH*3*HP)

    scale = 1.0 / math.sqrt(HEAD_DIM)
    ctxs = []
    for h in range(N_HEADS):                             # static unroll
        base = h * 3 * HP
        q = qkv[:, base:base + HP]                       # 128-aligned slices
        k = qkv[:, base + HP:base + 2 * HP]
        v = qkv[:, base + 2 * HP:base + 3 * HP]
        # contract last axes of q and k -> no explicit K transpose (no XLU)
        s = jax.lax.dot_general(q, k, (((1,), (1,)), ((), ())),
                                preferred_element_type=jnp.float32)
        s = s * scale + bias
        m = jnp.max(s, axis=-1, keepdims=True)
        p = jnp.exp(s - m)
        denom = jnp.sum(p, axis=-1, keepdims=True)
        p = p * pl.reciprocal(denom, approx=True)        # divide on the EUP
        ctx = jnp.dot(p.astype(jnp.bfloat16), v,
                      preferred_element_type=jnp.float32)
        ctxs.append(ctx.astype(jnp.bfloat16))
    ctx_all = jnp.concatenate(ctxs, axis=-1)             # (SP, NH*HP), aligned

    # --- attention out-projection + residual + LN1 ---------------------------
    attn = (jnp.dot(ctx_all, wo[...], preferred_element_type=jnp.float32)
            + bo[...])
    y1 = _layer_norm_f32(attn + x_res, ln1_g[...], ln1_b[...])
    y1_bf = y1.astype(jnp.bfloat16)

    # --- FFN up + GELU (tanh approx) ------------------------------------------
    hdn = (jnp.dot(y1_bf, w1[...], preferred_element_type=jnp.float32)
           + b1[...])
    hdn = 0.5 * hdn * (1.0 + jnp.tanh(
        0.7978845608028654 * (hdn + 0.044715 * hdn * hdn * hdn)))
    hdn_bf = hdn.astype(jnp.bfloat16)

    # --- FFN down + residual + LN2 --------------------------------------------
    y2 = (jnp.dot(hdn_bf, w2[...], preferred_element_type=jnp.float32)
          + b2[...] + y1)
    y2 = _layer_norm_f32(y2, ln2_g[...], ln2_b[...])
    o_ref[...] = y2.astype(o_ref.dtype)

    # --- (last layer only) QA head folded into the epilogue -------------------
    if with_qa:
        qa = (jnp.dot(y2.astype(jnp.bfloat16), qa_w[...],
                      preferred_element_type=jnp.float32) + qa_b[...])
        qa_ref[...] = qa.astype(qa_ref.dtype)


# ----------------------------------------------------------------------------
# Wrapper: one pallas_call per encoder layer, grid over batch
# ----------------------------------------------------------------------------
def encoder_layer(x, attn_bias, lp, *, input_ln=None, qa=None, B, SP):
    with_input_ln = input_ln is not None
    with_qa = qa is not None

    def tok_spec(width):
        return pl.BlockSpec((SP, width), lambda b: (b, 0))

    def const_spec(shape):
        # grid-invariant weight/bias block; Pallas keeps it resident across
        # the (small) batch grid.
        return pl.BlockSpec(shape, lambda b: (0, 0))

    inputs = [x, attn_bias]
    in_specs = [tok_spec(HIDDEN),
                pl.BlockSpec((1, 1, SP), lambda b: (b, 0, 0))]
    if with_input_ln:
        inputs += list(input_ln)
        in_specs += [const_spec((1, HIDDEN)), const_spec((1, HIDDEN))]
    inputs += [lp["wqkv_pad"], lp["bqkv_pad"], lp["wo_pad"], lp["bo"],
               lp["ln1_g"], lp["ln1_b"], lp["w1"], lp["b1"],
               lp["w2"], lp["b2"], lp["ln2_g"], lp["ln2_b"]]
    in_specs += [const_spec((HIDDEN, N_HEADS * 3 * HP)),
                 const_spec((1, N_HEADS * 3 * HP)),
                 const_spec((N_HEADS * HP, HIDDEN)), const_spec((1, HIDDEN)),
                 const_spec((1, HIDDEN)), const_spec((1, HIDDEN)),
                 const_spec((HIDDEN, FFN)), const_spec((1, FFN)),
                 const_spec((FFN, HIDDEN)), const_spec((1, HIDDEN)),
                 const_spec((1, HIDDEN)), const_spec((1, HIDDEN))]
    if with_qa:
        inputs += list(qa)
        in_specs += [const_spec((HIDDEN, QA_PAD)), const_spec((1, QA_PAD))]

    out_shape = [jax.ShapeDtypeStruct((B * SP, HIDDEN), jnp.bfloat16)]
    out_specs = [tok_spec(HIDDEN)]
    if with_qa:
        out_shape.append(jax.ShapeDtypeStruct((B * SP, QA_PAD), jnp.float32))
        out_specs.append(tok_spec(QA_PAD))

    return pl.pallas_call(
        functools.partial(_encoder_layer_kernel,
                          with_input_ln=with_input_ln, with_qa=with_qa),
        out_shape=tuple(out_shape),
        grid_spec=pltpu.PrefetchScalarGridSpec(
            num_scalar_prefetch=0,
            grid=(B,),
            in_specs=in_specs,
            out_specs=tuple(out_specs),
        ),
        compiler_params=pltpu.CompilerParams(
            dimension_semantics=("parallel",),
            vmem_limit_bytes=VMEM_LIMIT),
    )(*inputs)


# ----------------------------------------------------------------------------
# Parameter packing: 128-lane-aligned padded head slabs (zeros are inert)
# ----------------------------------------------------------------------------
def _pack_qkv_padded(wq, bq, wk, bk, wv, bv):
    """Columns [h*3*HP + j*HP : +HEAD_DIM] hold head h's {Q,K,V}[j] weights;
    the remaining lanes are zero (zero lanes don't change QK^T or P@V)."""
    wp = jnp.zeros((HIDDEN, N_HEADS * 3 * HP), jnp.float32)
    bp = jnp.zeros((N_HEADS * 3 * HP,), jnp.float32)
    for h in range(N_HEADS):
        for j, (w, b) in enumerate(((wq, bq), (wk, bk), (wv, bv))):
            dst = h * 3 * HP + j * HP
            wp = wp.at[:, dst:dst + HEAD_DIM].set(
                w[:, h * HEAD_DIM:(h + 1) * HEAD_DIM])
            bp = bp.at[dst:dst + HEAD_DIM].set(
                b[h * HEAD_DIM:(h + 1) * HEAD_DIM])
    return wp.astype(jnp.bfloat16), bp.reshape(1, -1)


def _pack_wo_padded(wo):
    """Rows padded to match the padded per-head context slabs."""
    wp = jnp.zeros((N_HEADS * HP, HIDDEN), jnp.float32)
    for h in range(N_HEADS):
        wp = wp.at[h * HP:h * HP + HEAD_DIM, :].set(
            wo[h * HEAD_DIM:(h + 1) * HEAD_DIM, :])
    return wp.astype(jnp.bfloat16)


def init_params(key):
    keys = iter(jax.random.split(key, 64))

    def nrm(shape):
        return 0.02 * jax.random.normal(next(keys), shape, jnp.float32)

    def zeros_row(n):
        return jnp.zeros((1, n), jnp.float32)

    qa_w = nrm((HIDDEN, 2))
    params = {
        "word_emb": nrm((VOCAB, HIDDEN)),
        "pos_emb": nrm((MAX_POS, HIDDEN)),
        "type_emb": nrm((TYPE_VOCAB, HIDDEN)),
        "emb_ln_g": jnp.ones((1, HIDDEN), jnp.float32),
        "emb_ln_b": zeros_row(HIDDEN),
        # nn.Linear(768, 2) analogue, padded to a lane-dense 128-wide output
        "qa_w_pad": (jnp.zeros((HIDDEN, QA_PAD), jnp.float32)
                     .at[:, :2].set(qa_w)).astype(jnp.bfloat16),
        "qa_b_pad": zeros_row(QA_PAD),
        "layers": [],
    }
    for _ in range(N_LAYERS):
        wq, wk, wv = (nrm((HIDDEN, HIDDEN)), nrm((HIDDEN, HIDDEN)),
                      nrm((HIDDEN, HIDDEN)))
        bq = jnp.zeros((HIDDEN,), jnp.float32)
        bk = jnp.zeros((HIDDEN,), jnp.float32)
        bv = jnp.zeros((HIDDEN,), jnp.float32)
        wqkv_pad, bqkv_pad = _pack_qkv_padded(wq, bq, wk, bk, wv, bv)
        params["layers"].append({
            "wqkv_pad": wqkv_pad, "bqkv_pad": bqkv_pad,
            "wo_pad": _pack_wo_padded(nrm((HIDDEN, HIDDEN))),
            "bo": zeros_row(HIDDEN),
            "ln1_g": jnp.ones((1, HIDDEN), jnp.float32),
            "ln1_b": zeros_row(HIDDEN),
            "w1": nrm((HIDDEN, FFN)).astype(jnp.bfloat16),
            "b1": zeros_row(FFN),
            "w2": nrm((FFN, HIDDEN)).astype(jnp.bfloat16),
            "b2": zeros_row(HIDDEN),
            "ln2_g": jnp.ones((1, HIDDEN), jnp.float32),
            "ln2_b": zeros_row(HIDDEN),
        })
    return params


# ----------------------------------------------------------------------------
# Forward pass (mirrors QuestionAnswering.forward)
# ----------------------------------------------------------------------------
def question_answering_forward(params, input_ids, token_type_ids=None,
                               attention_mask=None, start_positions=None,
                               end_positions=None):
    B, S = input_ids.shape
    SP = ((S + SUBLANE_BF16 - 1) // SUBLANE_BF16) * SUBLANE_BF16
    if token_type_ids is None:
        token_type_ids = jnp.zeros_like(input_ids)
    if attention_mask is None:
        attention_mask = jnp.ones_like(input_ids)

    # --- embeddings (gathers are glue; their LN is fused into layer 0) -------
    pos_ids = jnp.broadcast_to(jnp.arange(S)[None, :], (B, S))
    emb = (jnp.take(params["word_emb"], input_ids, axis=0)
           + jnp.take(params["pos_emb"], pos_ids, axis=0)
           + jnp.take(params["type_emb"], token_type_ids, axis=0))
    emb = emb.astype(jnp.bfloat16)                       # bf16 across boundary
    mask = attention_mask
    if SP != S:
        # pad tokens to full (16,128) bf16 tiles; padded keys get bias -1e4,
        # padded query rows are sliced away below.
        emb = jnp.pad(emb, ((0, 0), (0, SP - S), (0, 0)))
        mask = jnp.pad(mask, ((0, 0), (0, SP - S)))
    x = emb.reshape(B * SP, HIDDEN)
    attn_bias = ((1.0 - mask.astype(jnp.float32)) * -10000.0
                 ).reshape(B, 1, SP)

    # --- transformer encoder: one fused pallas_call per layer ----------------
    qa_logits = None
    n_layers = len(params["layers"])
    for li, lp in enumerate(params["layers"]):
        outs = encoder_layer(
            x, attn_bias, lp,
            input_ln=((params["emb_ln_g"], params["emb_ln_b"])
                      if li == 0 else None),
            qa=((params["qa_w_pad"], params["qa_b_pad"])
                if li == n_layers - 1 else None),
            B=B, SP=SP)
        x = outs[0]
        if li == n_layers - 1:
            qa_logits = outs[1]
        # dropout layers are identity in eval mode (omitted)

    # --- qa_outputs head already computed in the last layer's epilogue -------
    logits = qa_logits.reshape(B, SP, QA_PAD)[:, :S, :2]
    start_logits = logits[..., 0]      # split(1, dim=-1) + squeeze(-1)
    end_logits = logits[..., 1]

    if start_positions is not None and end_positions is not None:
        ignored_index = S
        sp_pos = jnp.clip(start_positions.reshape(B), 0, ignored_index)
        ep_pos = jnp.clip(end_positions.reshape(B), 0, ignored_index)

        # TODO(synk): CrossEntropyLoss(ignore_index) kept in plain JAX glue;
        # the hot path (fused encoder layers + head) is in Pallas.
        def ce(lg, pos):
            logp = jax.nn.log_softmax(lg.astype(jnp.float32), axis=-1)
            valid = pos < ignored_index
            safe = jnp.where(valid, pos, 0)
            nll = -jnp.take_along_axis(logp, safe[:, None], axis=1)[:, 0]
            denom = jnp.maximum(jnp.sum(valid), 1)
            return jnp.sum(jnp.where(valid, nll, 0.0)) / denom

        return (ce(start_logits, sp_pos) + ce(end_logits, ep_pos)) / 2.0

    return start_logits, end_logits


# ----------------------------------------------------------------------------
if __name__ == "__main__":
    B, S = 2, 8
    key = jax.random.PRNGKey(0)
    k_param, k_ids, k_type = jax.random.split(key, 3)

    params = init_params(k_param)
    input_ids = jax.random.randint(k_ids, (B, S), 0, VOCAB, dtype=jnp.int32)
    token_type_ids = jnp.concatenate(
        [jnp.zeros((B, S // 2), jnp.int32), jnp.ones((B, S - S // 2), jnp.int32)],
        axis=1)
    attention_mask = jnp.ones((B, S), jnp.int32)

    start_logits, end_logits = question_answering_forward(
        params, input_ids, token_type_ids, attention_mask)
    jax.block_until_ready((start_logits, end_logits))

    assert start_logits.shape == (B, S) and end_logits.shape == (B, S)
    assert bool(jnp.all(jnp.isfinite(start_logits))) and bool(
        jnp.all(jnp.isfinite(end_logits)))

    # also exercise the training (loss) branch once
    loss = question_answering_forward(
        params, input_ids, token_type_ids, attention_mask,
        start_positions=jnp.array([1, 3], jnp.int32),
        end_positions=jnp.array([2, 20], jnp.int32))  # 20 clamps -> ignored
    jax.block_until_ready(loss)
    assert bool(jnp.isfinite(loss))

    print("KERNEL_OK")
</pallas_src>

<mosaic_0001>
module attributes {stable_mosaic.version = 11 : i64} {
  func.func @_encoder_layer_kernel(%arg0: i32, %arg1: memref<16x128xbf16, #tpu.memory_space<vmem>>, %arg2: memref<1x1x16xf32, #tpu.memory_space<vmem>>, %arg3: memref<1x128xf32, #tpu.memory_space<vmem>>, %arg4: memref<1x128xf32, #tpu.memory_space<vmem>>, %arg5: memref<128x768xbf16, #tpu.memory_space<vmem>>, %arg6: memref<1x768xf32, #tpu.memory_space<vmem>>, %arg7: memref<256x128xbf16, #tpu.memory_space<vmem>>, %arg8: memref<1x128xf32, #tpu.memory_space<vmem>>, %arg9: memref<1x128xf32, #tpu.memory_space<vmem>>, %arg10: memref<1x128xf32, #tpu.memory_space<vmem>>, %arg11: memref<128x256xbf16, #tpu.memory_space<vmem>>, %arg12: memref<1x256xf32, #tpu.memory_space<vmem>>, %arg13: memref<256x128xbf16, #tpu.memory_space<vmem>>, %arg14: memref<1x128xf32, #tpu.memory_space<vmem>>, %arg15: memref<1x128xf32, #tpu.memory_space<vmem>>, %arg16: memref<1x128xf32, #tpu.memory_space<vmem>>, %arg17: memref<16x128xbf16, #tpu.memory_space<vmem>>) attributes {dimension_semantics = [#tpu.dimension_semantics<parallel>], iteration_bounds = array<i64: 2>, scalar_prefetch = 0 : i64, scratch_operands = 0 : i64, tpu.core_type = #tpu.core_type<tc>, window_params = [{transform_indices = @transform_0, window_bounds = array<i64: 16, 128>}, {transform_indices = @transform_1, window_bounds = array<i64: 1, 1, 16>}, {pipeline_mode = #tpu.pipeline_mode<synchronous>, transform_indices = @transform_2, window_bounds = array<i64: 1, 128>}, {pipeline_mode = #tpu.pipeline_mode<synchronous>, transform_indices = @transform_3, window_bounds = array<i64: 1, 128>}, {pipeline_mode = #tpu.pipeline_mode<synchronous>, transform_indices = @transform_4, window_bounds = array<i64: 128, 768>}, {pipeline_mode = #tpu.pipeline_mode<synchronous>, transform_indices = @transform_5, window_bounds = array<i64: 1, 768>}, {pipeline_mode = #tpu.pipeline_mode<synchronous>, transform_indices = @transform_6, window_bounds = array<i64: 256, 128>}, {pipeline_mode = #tpu.pipeline_mode<synchronous>, transform_indices = @transform_7, window_bounds = array<i64: 1, 128>}, {pipeline_mode = #tpu.pipeline_mode<synchronous>, transform_indices = @transform_8, window_bounds = array<i64: 1, 128>}, {pipeline_mode = #tpu.pipeline_mode<synchronous>, transform_indices = @transform_9, window_bounds = array<i64: 1, 128>}, {pipeline_mode = #tpu.pipeline_mode<synchronous>, transform_indices = @transform_10, window_bounds = array<i64: 128, 256>}, {pipeline_mode = #tpu.pipeline_mode<synchronous>, transform_indices = @transform_11, window_bounds = array<i64: 1, 256>}, {pipeline_mode = #tpu.pipeline_mode<synchronous>, transform_indices = @transform_12, window_bounds = array<i64: 256, 128>}, {pipeline_mode = #tpu.pipeline_mode<synchronous>, transform_indices = @transform_13, window_bounds = array<i64: 1, 128>}, {pipeline_mode = #tpu.pipeline_mode<synchronous>, transform_indices = @transform_14, window_bounds = array<i64: 1, 128>}, {pipeline_mode = #tpu.pipeline_mode<synchronous>, transform_indices = @transform_15, window_bounds = array<i64: 1, 128>}, {transform_indices = @transform_16, window_bounds = array<i64: 16, 128>}]} {
    %c0 = arith.constant 0 : index
    %c0_0 = arith.constant 0 : index
    %0 = vector.load %arg1[%c0, %c0_0] : memref<16x128xbf16, #tpu.memory_space<vmem>>, vector<16x128xbf16>
    %1 = arith.extf %0 : vector<16x128xbf16> to vector<16x128xf32>
    %c0_1 = arith.constant 0 : index
    %c0_2 = arith.constant 0 : index
    %2 = vector.load %arg3[%c0_1, %c0_2] : memref<1x128xf32, #tpu.memory_space<vmem>>, vector<1x128xf32>
    %c0_3 = arith.constant 0 : index
    %c0_4 = arith.constant 0 : index
    %3 = vector.load %arg4[%c0_3, %c0_4] : memref<1x128xf32, #tpu.memory_space<vmem>>, vector<1x128xf32>
    %cst = arith.constant dense<0.000000e+00> : vector<16xf32>
    %4 = vector.multi_reduction <add>, %1, %cst [1] : vector<16x128xf32> to vector<16xf32>
    %5 = vector.shape_cast %4 : vector<16xf32> to vector<16x1xf32>
    %cst_5 = arith.constant 1.280000e+02 : f32
    %6 = vector.broadcast %cst_5 : f32 to vector<16x1xf32>
    %7 = arith.divf %5, %6 : vector<16x1xf32>
    %8 = vector.broadcast %7 : vector<16x1xf32> to vector<16x128xf32>
    %9 = arith.subf %1, %8 : vector<16x128xf32>
    %10 = arith.mulf %9, %9 : vector<16x128xf32>
    %cst_6 = arith.constant dense<0.000000e+00> : vector<16xf32>
    %11 = vector.multi_reduction <add>, %10, %cst_6 [1] : vector<16x128xf32> to vector<16xf32>
    %12 = vector.shape_cast %11 : vector<16xf32> to vector<16x1xf32>
    %cst_7 = arith.constant 1.280000e+02 : f32
    %13 = vector.broadcast %cst_7 : f32 to vector<16x1xf32>
    %14 = arith.divf %12, %13 : vector<16x1xf32>
    %cst_8 = arith.constant 9.99999996E-13 : f32
    %15 = vector.broadcast %cst_8 : f32 to vector<16x1xf32>
    %16 = arith.addf %14, %15 : vector<16x1xf32>
    %17 = math.rsqrt %16 : vector<16x1xf32>
    %18 = vector.broadcast %17 : vector<16x1xf32> to vector<16x128xf32>
    %19 = arith.mulf %9, %18 : vector<16x128xf32>
    %20 = vector.broadcast %2 : vector<1x128xf32> to vector<16x128xf32>
    %21 = arith.mulf %19, %20 : vector<16x128xf32>
    %22 = vector.broadcast %3 : vector<1x128xf32> to vector<16x128xf32>
    %23 = arith.addf %21, %22 : vector<16x128xf32>
    %24 = arith.truncf %23 : vector<16x128xf32> to vector<16x128xbf16>
    %c0_9 = arith.constant 0 : index
    %c0_10 = arith.constant 0 : index
    %c0_11 = arith.constant 0 : index
    %25 = vector.load %arg2[%c0_9, %c0_10, %c0_11] : memref<1x1x16xf32, #tpu.memory_space<vmem>>, vector<1x1x16xf32>
    %26 = vector.shape_cast %25 : vector<1x1x16xf32> to vector<1x16xf32>
    %c0_12 = arith.constant 0 : index
    %c0_13 = arith.constant 0 : index
    %27 = vector.load %arg5[%c0_12, %c0_13] : memref<128x768xbf16, #tpu.memory_space<vmem>>, vector<128x768xbf16>
    %cst_14 = arith.constant dense<0.000000e+00> : vector<16x768xf32>
    %28 = tpu.matmul %24, %27, %cst_14 {dimension_numbers = #tpu.dot_dimension_numbers<[1], [0], [0], [1], [0, 0, 1, 1], [], []>} : vector<16x128xbf16>, vector<128x768xbf16>, vector<16x768xf32> -> vector<16x768xf32>
    %c0_15 = arith.constant 0 : index
    %c0_16 = arith.constant 0 : index
    %29 = vector.load %arg6[%c0_15, %c0_16] : memref<1x768xf32, #tpu.memory_space<vmem>>, vector<1x768xf32>
    %30 = vector.broadcast %29 : vector<1x768xf32> to vector<16x768xf32>
    %31 = arith.addf %28, %30 : vector<16x768xf32>
    %32 = arith.truncf %31 : vector<16x768xf32> to vector<16x768xbf16>
    %33 = vector.extract_strided_slice %32 {offsets = [0, 0], sizes = [16, 128], strides = [1, 1]} : vector<16x768xbf16> to vector<16x128xbf16>
    %34 = vector.extract_strided_slice %32 {offsets = [0, 128], sizes = [16, 128], strides = [1, 1]} : vector<16x768xbf16> to vector<16x128xbf16>
    %35 = vector.extract_strided_slice %32 {offsets = [0, 256], sizes = [16, 128], strides = [1, 1]} : vector<16x768xbf16> to vector<16x128xbf16>
    %cst_17 = arith.constant dense<0.000000e+00> : vector<16x16xf32>
    %36 = tpu.matmul %33, %34, %cst_17 {dimension_numbers = #tpu.dot_dimension_numbers<[1], [1], [0], [0], [0, 0, 1, 0], [], []>} : vector<16x128xbf16>, vector<16x128xbf16>, vector<16x16xf32> -> vector<16x16xf32>
    %cst_18 = arith.constant 1.250000e-01 : f32
    %37 = vector.broadcast %cst_18 : f32 to vector<16x16xf32>
    %38 = arith.mulf %36, %37 : vector<16x16xf32>
    %39 = vector.broadcast %26 : vector<1x16xf32> to vector<16x16xf32>
    %40 = arith.addf %38, %39 : vector<16x16xf32>
    %cst_19 = arith.constant dense<0xFF800000> : vector<16xf32>
    %41 = vector.multi_reduction <maximumf>, %40, %cst_19 [1] : vector<16x16xf32> to vector<16xf32>
    %42 = vector.shape_cast %41 : vector<16xf32> to vector<16x1xf32>
    %43 = vector.broadcast %42 : vector<16x1xf32> to vector<16x16xf32>
    %44 = arith.subf %40, %43 : vector<16x16xf32>
    %45 = math.exp %44 : vector<16x16xf32>
    %cst_20 = arith.constant dense<0.000000e+00> : vector<16xf32>
    %46 = vector.multi_reduction <add>, %45, %cst_20 [1] : vector<16x16xf32> to vector<16xf32>
    %47 = vector.shape_cast %46 : vector<16xf32> to vector<16x1xf32>
    %48 = tpu.reciprocal %47 {approx = true} : vector<16x1xf32> -> vector<16x1xf32>
    %49 = vector.broadcast %48 : vector<16x1xf32> to vector<16x16xf32>
    %50 = arith.mulf %45, %49 : vector<16x16xf32>
    %51 = arith.truncf %50 : vector<16x16xf32> to vector<16x16xbf16>
    %cst_21 = arith.constant dense<0.000000e+00> : vector<16x128xf32>
    %52 = tpu.matmul %51, %35, %cst_21 {dimension_numbers = #tpu.dot_dimension_numbers<[1], [0], [0], [1], [0, 0, 1, 1], [], []>} : vector<16x16xbf16>, vector<16x128xbf16>, vector<16x128xf32> -> vector<16x128xf32>
    %53 = arith.truncf %52 : vector<16x128xf32> to vector<16x128xbf16>
    %54 = vector.extract_strided_slice %32 {offsets = [0, 384], sizes = [16, 128], strides = [1, 1]} : vector<16x768xbf16> to vector<16x128xbf16>
    %55 = vector.extract_strided_slice %32 {offsets = [0, 512], sizes = [16, 128], strides = [1, 1]} : vector<16x768xbf16> to vector<16x128xbf16>
    %56 = vector.extract_strided_slice %32 {offsets = [0, 640], sizes = [16, 128], strides = [1, 1]} : vector<16x768xbf16> to vector<16x128xbf16>
    %cst_22 = arith.constant dense<0.000000e+00> : vector<16x16xf32>
    %57 = tpu.matmul %54, %55, %cst_22 {dimension_numbers = #tpu.dot_dimension_numbers<[1], [1], [0], [0], [0, 0, 1, 0], [], []>} : vector<16x128xbf16>, vector<16x128xbf16>, vector<16x16xf32> -> vector<16x16xf32>
    %cst_23 = arith.constant 1.250000e-01 : f32
    %58 = vector.broadcast %cst_23 : f32 to vector<16x16xf32>
    %59 = arith.mulf %57, %58 : vector<16x16xf32>
    %60 = vector.broadcast %26 : vector<1x16xf32> to vector<16x16xf32>
    %61 = arith.addf %59, %60 : vector<16x16xf32>
    %cst_24 = arith.constant dense<0xFF800000> : vector<16xf32>
    %62 = vector.multi_reduction <maximumf>, %61, %cst_24 [1] : vector<16x16xf32> to vector<16xf32>
    %63 = vector.shape_cast %62 : vector<16xf32> to vector<16x1xf32>
    %64 = vector.broadcast %63 : vector<16x1xf32> to vector<16x16xf32>
    %65 = arith.subf %61, %64 : vector<16x16xf32>
    %66 = math.exp %65 : vector<16x16xf32>
    %cst_25 = arith.constant dense<0.000000e+00> : vector<16xf32>
    %67 = vector.multi_reduction <add>, %66, %cst_25 [1] : vector<16x16xf32> to vector<16xf32>
    %68 = vector.shape_cast %67 : vector<16xf32> to vector<16x1xf32>
    %69 = tpu.reciprocal %68 {approx = true} : vector<16x1xf32> -> vector<16x1xf32>
    %70 = vector.broadcast %69 : vector<16x1xf32> to vector<16x16xf32>
    %71 = arith.mulf %66, %70 : vector<16x16xf32>
    %72 = arith.truncf %71 : vector<16x16xf32> to vector<16x16xbf16>
    %cst_26 = arith.constant dense<0.000000e+00> : vector<16x128xf32>
    %73 = tpu.matmul %72, %56, %cst_26 {dimension_numbers = #tpu.dot_dimension_numbers<[1], [0], [0], [1], [0, 0, 1, 1], [], []>} : vector<16x16xbf16>, vector<16x128xbf16>, vector<16x128xf32> -> vector<16x128xf32>
    %74 = arith.truncf %73 : vector<16x128xf32> to vector<16x128xbf16>
    %75 = tpu.concatenate %53, %74 in 1 : vector<16x128xbf16>, vector<16x128xbf16> -> vector<16x256xbf16>
    %c0_27 = arith.constant 0 : index
    %c0_28 = arith.constant 0 : index
    %76 = vector.load %arg7[%c0_27, %c0_28] : memref<256x128xbf16, #tpu.memory_space<vmem>>, vector<256x128xbf16>
    %cst_29 = arith.constant dense<0.000000e+00> : vector<16x128xf32>
    %77 = tpu.matmul %75, %76, %cst_29 {dimension_numbers = #tpu.dot_dimension_numbers<[1], [0], [0], [1], [0, 0, 1, 1], [], []>} : vector<16x256xbf16>, vector<256x128xbf16>, vector<16x128xf32> -> vector<16x128xf32>
    %c0_30 = arith.constant 0 : index
    %c0_31 = arith.constant 0 : index
    %78 = vector.load %arg8[%c0_30, %c0_31] : memref<1x128xf32, #tpu.memory_space<vmem>>, vector<1x128xf32>
    %79 = vector.broadcast %78 : vector<1x128xf32> to vector<16x128xf32>
    %80 = arith.addf %77, %79 : vector<16x128xf32>
    %81 = arith.addf %80, %23 : vector<16x128xf32>
    %c0_32 = arith.constant 0 : index
    %c0_33 = arith.constant 0 : index
    %82 = vector.load %arg9[%c0_32, %c0_33] : memref<1x128xf32, #tpu.memory_space<vmem>>, vector<1x128xf32>
    %c0_34 = arith.constant 0 : index
    %c0_35 = arith.constant 0 : index
    %83 = vector.load %arg10[%c0_34, %c0_35] : memref<1x128xf32, #tpu.memory_space<vmem>>, vector<1x128xf32>
    %cst_36 = arith.constant dense<0.000000e+00> : vector<16xf32>
    %84 = vector.multi_reduction <add>, %81, %cst_36 [1] : vector<16x128xf32> to vector<16xf32>
    %85 = vector.shape_cast %84 : vector<16xf32> to vector<16x1xf32>
    %cst_37 = arith.constant 1.280000e+02 : f32
    %86 = vector.broadcast %cst_37 : f32 to vector<16x1xf32>
    %87 = arith.divf %85, %86 : vector<16x1xf32>
    %88 = vector.broadcast %87 : vector<16x1xf32> to vector<16x128xf32>
    %89 = arith.subf %81, %88 : vector<16x128xf32>
    %90 = arith.mulf %89, %89 : vector<16x128xf32>
    %cst_38 = arith.constant dense<0.000000e+00> : vector<16xf32>
    %91 = vector.multi_reduction <add>, %90, %cst_38 [1] : vector<16x128xf32> to vector<16xf32>
    %92 = vector.shape_cast %91 : vector<16xf32> to vector<16x1xf32>
    %cst_39 = arith.constant 1.280000e+02 : f32
    %93 = vector.broadcast %cst_39 : f32 to vector<16x1xf32>
    %94 = arith.divf %92, %93 : vector<16x1xf32>
    %cst_40 = arith.constant 9.99999996E-13 : f32
    %95 = vector.broadcast %cst_40 : f32 to vector<16x1xf32>
    %96 = arith.addf %94, %95 : vector<16x1xf32>
    %97 = math.rsqrt %96 : vector<16x1xf32>
    %98 = vector.broadcast %97 : vector<16x1xf32> to vector<16x128xf32>
    %99 = arith.mulf %89, %98 : vector<16x128xf32>
    %100 = vector.broadcast %82 : vector<1x128xf32> to vector<16x128xf32>
    %101 = arith.mulf %99, %100 : vector<16x128xf32>
    %102 = vector.broadcast %83 : vector<1x128xf32> to vector<16x128xf32>
    %103 = arith.addf %101, %102 : vector<16x128xf32>
    %104 = arith.truncf %103 : vector<16x128xf32> to vector<16x128xbf16>
    %c0_41 = arith.constant 0 : index
    %c0_42 = arith.constant 0 : index
    %105 = vector.load %arg11[%c0_41, %c0_42] : memref<128x256xbf16, #tpu.memory_space<vmem>>, vector<128x256xbf16>
    %cst_43 = arith.constant dense<0.000000e+00> : vector<16x256xf32>
    %106 = tpu.matmul %104, %105, %cst_43 {dimension_numbers = #tpu.dot_dimension_numbers<[1], [0], [0], [1], [0, 0, 1, 1], [], []>} : vector<16x128xbf16>, vector<128x256xbf16>, vector<16x256xf32> -> vector<16x256xf32>
    %c0_44 = arith.constant 0 : index
    %c0_45 = arith.constant 0 : index
    %107 = vector.load %arg12[%c0_44, %c0_45] : memref<1x256xf32, #tpu.memory_space<vmem>>, vector<1x256xf32>
    %108 = vector.broadcast %107 : vector<1x256xf32> to vector<16x256xf32>
    %109 = arith.addf %106, %108 : vector<16x256xf32>
    %cst_46 = arith.constant 5.000000e-01 : f32
    %110 = vector.broadcast %cst_46 : f32 to vector<16x256xf32>
    %111 = arith.mulf %110, %109 : vector<16x256xf32>
    %cst_47 = arith.constant 4.471500e-02 : f32
    %112 = vector.broadcast %cst_47 : f32 to vector<16x256xf32>
    %113 = arith.mulf %112, %109 : vector<16x256xf32>
    %114 = arith.mulf %113, %109 : vector<16x256xf32>
    %115 = arith.mulf %114, %109 : vector<16x256xf32>
    %116 = arith.addf %109, %115 : vector<16x256xf32>
    %cst_48 = arith.constant 0.797884583 : f32
    %117 = vector.broadcast %cst_48 : f32 to vector<16x256xf32>
    %118 = arith.mulf %117, %116 : vector<16x256xf32>
    %119 = math.tanh %118 : vector<16x256xf32>
    %cst_49 = arith.constant 1.000000e+00 : f32
    %120 = vector.broadcast %cst_49 : f32 to vector<16x256xf32>
    %121 = arith.addf %120, %119 : vector<16x256xf32>
    %122 = arith.mulf %111, %121 : vector<16x256xf32>
    %123 = arith.truncf %122 : vector<16x256xf32> to vector<16x256xbf16>
    %c0_50 = arith.constant 0 : index
    %c0_51 = arith.constant 0 : index
    %124 = vector.load %arg13[%c0_50, %c0_51] : memref<256x128xbf16, #tpu.memory_space<vmem>>, vector<256x128xbf16>
    %cst_52 = arith.constant dense<0.000000e+00> : vector<16x128xf32>
    %125 = tpu.matmul %123, %124, %cst_52 {dimension_numbers = #tpu.dot_dimension_numbers<[1], [0], [0], [1], [0, 0, 1, 1], [], []>} : vector<16x256xbf16>, vector<256x128xbf16>, vector<16x128xf32> -> vector<16x128xf32>
    %c0_53 = arith.constant 0 : index
    %c0_54 = arith.constant 0 : index
    %126 = vector.load %arg14[%c0_53, %c0_54] : memref<1x128xf32, #tpu.memory_space<vmem>>, vector<1x128xf32>
    %127 = vector.broadcast %126 : vector<1x128xf32> to vector<16x128xf32>
    %128 = arith.addf %125, %127 : vector<16x128xf32>
    %129 = arith.addf %128, %103 : vector<16x128xf32>
    %c0_55 = arith.constant 0 : index
    %c0_56 = arith.constant 0 : index
    %130 = vector.load %arg15[%c0_55, %c0_56] : memref<1x128xf32, #tpu.memory_space<vmem>>, vector<1x128xf32>
    %c0_57 = arith.constant 0 : index
    %c0_58 = arith.constant 0 : index
    %131 = vector.load %arg16[%c0_57, %c0_58] : memref<1x128xf32, #tpu.memory_space<vmem>>, vector<1x128xf32>
    %cst_59 = arith.constant dense<0.000000e+00> : vector<16xf32>
    %132 = vector.multi_reduction <add>, %129, %cst_59 [1] : vector<16x128xf32> to vector<16xf32>
    %133 = vector.shape_cast %132 : vector<16xf32> to vector<16x1xf32>
    %cst_60 = arith.constant 1.280000e+02 : f32
    %134 = vector.broadcast %cst_60 : f32 to vector<16x1xf32>
    %135 = arith.divf %133, %134 : vector<16x1xf32>
    %136 = vector.broadcast %135 : vector<16x1xf32> to vector<16x128xf32>
    %137 = arith.subf %129, %136 : vector<16x128xf32>
    %138 = arith.mulf %137, %137 : vector<16x128xf32>
    %cst_61 = arith.constant dense<0.000000e+00> : vector<16xf32>
    %139 = vector.multi_reduction <add>, %138, %cst_61 [1] : vector<16x128xf32> to vector<16xf32>
    %140 = vector.shape_cast %139 : vector<16xf32> to vector<16x1xf32>
    %cst_62 = arith.constant 1.280000e+02 : f32
    %141 = vector.broadcast %cst_62 : f32 to vector<16x1xf32>
    %142 = arith.divf %140, %141 : vector<16x1xf32>
    %cst_63 = arith.constant 9.99999996E-13 : f32
    %143 = vector.broadcast %cst_63 : f32 to vector<16x1xf32>
    %144 = arith.addf %142, %143 : vector<16x1xf32>
    %145 = math.rsqrt %144 : vector<16x1xf32>
    %146 = vector.broadcast %145 : vector<16x1xf32> to vector<16x128xf32>
    %147 = arith.mulf %137, %146 : vector<16x128xf32>
    %148 = vector.broadcast %130 : vector<1x128xf32> to vector<16x128xf32>
    %149 = arith.mulf %147, %148 : vector<16x128xf32>
    %150 = vector.broadcast %131 : vector<1x128xf32> to vector<16x128xf32>
    %151 = arith.addf %149, %150 : vector<16x128xf32>
    %152 = arith.truncf %151 : vector<16x128xf32> to vector<16x128xbf16>
    %c0_64 = arith.constant 0 : index
    %c0_65 = arith.constant 0 : index
    %153 = vector.load %arg17[%c0_64, %c0_65] : memref<16x128xbf16, #tpu.memory_space<vmem>>, vector<16x128xbf16>
    tpu.vector_store %arg17[%c0_64, %c0_65], %152 {strides = array<i32>} : memref<16x128xbf16, #tpu.memory_space<vmem>>, vector<16x128xbf16>,
    return
  }
  func.func @transform_0(%arg0: i32) -> (i32, i32) {
    %c0_i32 = arith.constant 0 : i32
    %c0_i32_0 = arith.constant 0 : i32
    return %arg0, %c0_i32 : i32, i32
  }
  func.func @transform_1(%arg0: i32) -> (i32, i32, i32) {
    %c0_i32 = arith.constant 0 : i32
    %c0_i32_0 = arith.constant 0 : i32
    %c0_i32_1 = arith.constant 0 : i32
    return %arg0, %c0_i32, %c0_i32_0 : i32, i32, i32
  }
  func.func @transform_2(%arg0: i32) -> (i32, i32) {
    %c0_i32 = arith.constant 0 : i32
    %c0_i32_0 = arith.constant 0 : i32
    %c0_i32_1 = arith.constant 0 : i32
    return %c0_i32, %c0_i32_0 : i32, i32
  }
  func.func @transform_3(%arg0: i32) -> (i32, i32) {
    %c0_i32 = arith.constant 0 : i32
    %c0_i32_0 = arith.constant 0 : i32
    %c0_i32_1 = arith.constant 0 : i32
    return %c0_i32, %c0_i32_0 : i32, i32
  }
  func.func @transform_4(%arg0: i32) -> (i32, i32) {
    %c0_i32 = arith.constant 0 : i32
    %c0_i32_0 = arith.constant 0 : i32
    %c0_i32_1 = arith.constant 0 : i32
    return %c0_i32, %c0_i32_0 : i32, i32
  }
  func.func @transform_5(%arg0: i32) -> (i32, i32) {
    %c0_i32 = arith.constant 0 : i32
    %c0_i32_0 = arith.constant 0 : i32
    %c0_i32_1 = arith.constant 0 : i32
    return %c0_i32, %c0_i32_0 : i32, i32
  }
  func.func @transform_6(%arg0: i32) -> (i32, i32) {
    %c0_i32 = arith.constant 0 : i32
    %c0_i32_0 = arith.constant 0 : i32
    %c0_i32_1 = arith.constant 0 : i32
    return %c0_i32, %c0_i32_0 : i32, i32
  }
  func.func @transform_7(%arg0: i32) -> (i32, i32) {
    %c0_i32 = arith.constant 0 : i32
    %c0_i32_0 = arith.constant 0 : i32
    %c0_i32_1 = arith.constant 0 : i32
    return %c0_i32, %c0_i32_0 : i32, i32
  }
  func.func @transform_8(%arg0: i32) -> (i32, i32) {
    %c0_i32 = arith.constant 0 : i32
    %c0_i32_0 = arith.constant 0 : i32
    %c0_i32_1 = arith.constant 0 : i32
    return %c0_i32, %c0_i32_0 : i32, i32
  }
  func.func @transform_9(%arg0: i32) -> (i32, i32) {
    %c0_i32 = arith.constant 0 : i32
    %c0_i32_0 = arith.constant 0 : i32
    %c0_i32_1 = arith.constant 0 : i32
    return %c0_i32, %c0_i32_0 : i32, i32
  }
  func.func @transform_10(%arg0: i32) -> (i32, i32) {
    %c0_i32 = arith.constant 0 : i32
    %c0_i32_0 = arith.constant 0 : i32
    %c0_i32_1 = arith.constant 0 : i32
    return %c0_i32, %c0_i32_0 : i32, i32
  }
  func.func @transform_11(%arg0: i32) -> (i32, i32) {
    %c0_i32 = arith.constant 0 : i32
    %c0_i32_0 = arith.constant 0 : i32
    %c0_i32_1 = arith.constant 0 : i32
    return %c0_i32, %c0_i32_0 : i32, i32
  }
  func.func @transform_12(%arg0: i32) -> (i32, i32) {
    %c0_i32 = arith.constant 0 : i32
    %c0_i32_0 = arith.constant 0 : i32
    %c0_i32_1 = arith.constant 0 : i32
    return %c0_i32, %c0_i32_0 : i32, i32
  }
  func.func @transform_13(%arg0: i32) -> (i32, i32) {
    %c0_i32 = arith.constant 0 : i32
    %c0_i32_0 = arith.constant 0 : i32
    %c0_i32_1 = arith.constant 0 : i32
    return %c0_i32, %c0_i32_0 : i32, i32
  }
  func.func @transform_14(%arg0: i32) -> (i32, i32) {
    %c0_i32 = arith.constant 0 : i32
    %c0_i32_0 = arith.constant 0 : i32
    %c0_i32_1 = arith.constant 0 : i32
    return %c0_i32, %c0_i32_0 : i32, i32
  }
  func.func @transform_15(%arg0: i32) -> (i32, i32) {
    %c0_i32 = arith.constant 0 : i32
    %c0_i32_0 = arith.constant 0 : i32
    %c0_i32_1 = arith.constant 0 : i32
    return %c0_i32, %c0_i32_0 : i32, i32
  }
  func.func @transform_16(%arg0: i32) -> (i32, i32) {
    %c0_i32 = arith.constant 0 : i32
    %c0_i32_0 = arith.constant 0 : i32
    return %arg0, %c0_i32 : i32, i32
  }
}

</mosaic_0001>

<llo_original>
// kernel: tpu_custom_call.1
$region0: #{tpu_custom_call.1}
  #allocation0 [shape = 'u32[]', space=smem, size = 0x4, offset = 0x4, fixed_abs, tag = 'smem constant byte address 0x4 - core index']
  #allocation1 [shape = 'u32[144,128]{1,0:T(1,128)}', space=vmem, size = 0x12000, scoped, tag = 'internal scratch']
  %s0 = inlined_call_operand.hbm [shape: bf16[32,128], index: 0, kind: input, shape index: {}]
  %s1 = inlined_call_operand.hbm [shape: f32[2,1,16], index: 1, kind: input, shape index: {}]
  %s2 = inlined_call_operand.vmem [shape: f32[1,128], index: 2, kind: input, shape index: {}]
  %s3 = inlined_call_operand.hbm [shape: f32[1,128], index: 3, kind: input, shape index: {}]
  %s4 = inlined_call_operand.hbm [shape: bf16[128,768], index: 4, kind: input, shape index: {}]
  %s5 = inlined_call_operand.vmem [shape: f32[1,768], index: 5, kind: input, shape index: {}]
  %s6 = inlined_call_operand.hbm [shape: bf16[256,128], index: 6, kind: input, shape index: {}]
  %s7 = inlined_call_operand.vmem [shape: f32[1,128], index: 7, kind: input, shape index: {}]
  %s8 = inlined_call_operand.vmem [shape: f32[1,128], index: 8, kind: input, shape index: {}]
  %s9 = inlined_call_operand.vmem [shape: f32[1,128], index: 9, kind: input, shape index: {}]
  %s10 = inlined_call_operand.hbm [shape: bf16[128,256], index: 10, kind: input, shape index: {}]
  %s11 = inlined_call_operand.vmem [shape: f32[1,256], index: 11, kind: input, shape index: {}]
  %s12 = inlined_call_operand.hbm [shape: bf16[256,128], index: 12, kind: input, shape index: {}]
  %s13 = inlined_call_operand.vmem [shape: f32[1,128], index: 13, kind: input, shape index: {}]
  %s14 = inlined_call_operand.vmem [shape: f32[1,128], index: 14, kind: input, shape index: {}]
  %s15 = inlined_call_operand.vmem [shape: f32[1,128], index: 15, kind: input, shape index: {}]
  %s16 = inlined_call_operand.hbm [shape: bf16[32,128], index: 16, kind: output, shape index: {}]
  %s17 = sld [smem:[#allocation0]]
  $region125: #{tpu_custom_call.1} parent=0
    _
  %s19 = ssub.s32 1, %s17
  %s20 = scalar_select 0, %s19, %s17
  $region1: #{tpu_custom_call.1} parent=0
    #allocation2 [shape = 'u8[8192]{0}', space=vmem, size = 0x2000, scoped, tag = 'input window, operand 0']
    #allocation3 [shape = 's32[2]{0}', space=sflag, size = 0x8, scoped, tag = 'scoped memory for tpu_custom_call.1']
    #allocation4 [shape = 's32[2]{0}', space=sflag, size = 0x8, scoped, tag = 'scoped memory for tpu_custom_call.1']
    #allocation5 [shape = 'u8[1024]{0}', space=vmem, size = 0x400, scoped, tag = 'input window, operand 1']
    #allocation6 [shape = 's32[2]{0}', space=sflag, size = 0x8, scoped, tag = 'scoped memory for tpu_custom_call.1']
    #allocation7 [shape = 'u8[512]{0}', space=vmem, size = 0x400, scoped, tag = 'input window, operand 3, single buffered']
    #allocation8 [shape = 'u8[196608]{0}', space=vmem, size = 0x30000, scoped, tag = 'input window, operand 4, single buffered']
    #allocation9 [shape = 's32[1]{0}', space=sflag, size = 0x4, scoped, tag = 'scoped memory for tpu_custom_call.1']
    #allocation10 [shape = 'u8[65536]{0}', space=vmem, size = 0x10000, scoped, tag = 'input window, operand 6, single buffered']
    #allocation11 [shape = 'u8[65536]{0}', space=vmem, size = 0x10000, scoped, tag = 'input window, operand 10, single buffered']
    #allocation12 [shape = 's32[1]{0}', space=sflag, size = 0x4, scoped, tag = 'scoped memory for tpu_custom_call.1']
    #allocation13 [shape = 'u8[65536]{0}', space=vmem, size = 0x10000, scoped, tag = 'input window, operand 12, single buffered']
    #allocation14 [shape = 'u8[8192]{0}', space=vmem, size = 0x2000, scoped, tag = 'output window, operand 0']
    %21 = vsyncpa [#allocation3], 0
    %s22 = scalar_lea.sflag [#allocation3], 1
    %23 = vsyncpa %s22, 0
    %24 = vsyncpa [#allocation6], 0
    %s25 = scalar_lea.sflag [#allocation6], 1
    %26 = vsyncpa %s25, 0
    %27 = vsyncpa [#allocation9], 0
    %28 = vsyncpa [#allocation12], 0
    %29 = vsyncpa [#allocation4], 0
    %s30 = scalar_lea.sflag [#allocation4], 1
    %31 = vsyncpa %s30, 0
    loop: start=0, step=1, limit=4
    $region2: #{tpu_custom_call.1} parent=1 // loop_pre_header
      _
    $region3: #{tpu_custom_call.1} parent=1 // loop_header
      %s33 = sphi 0, %s37
      %p34 = scmp.ge.s32.totalorder %s33, 4
      %s43 = sphi 0, %s45
      %s46 = sphi 0, %s43
      %s47 = sphi 0, %s46
      %s63 = sphi 0, %s47
      %s69 = sphi 0, %s71
      %s72 = sphi 0, %s69
      %s73 = sphi 0, %s72
      %s89 = sphi 0, %s73
      %s93 = sphi 0, %s93
      %s95 = sphi 0, %s93
      %s96 = sphi 0, %s95
      %s110 = sphi 0, %s96
      %s114 = sphi 0, %s114
      %s116 = sphi 0, %s114
      %s117 = sphi 0, %s116
      %s131 = sphi 0, %s117
      %s135 = sphi 0, %s135
      %s137 = sphi 0, %s135
      %s138 = sphi 0, %s137
      %s152 = sphi 0, %s138
      %s156 = sphi 0, %s156
      %s158 = sphi 0, %s156
      %s159 = sphi 0, %s158
      %s173 = sphi 0, %s159
      %s177 = sphi 0, %s177
      %s179 = sphi 0, %s177
      %s180 = sphi 0, %s179
      %s194 = sphi 0, %s180
      %s198 = sphi 0, %s198
      %s200 = sphi 0, %s198
      %s201 = sphi 0, %s200
      %s215 = sphi 0, %s201
      %s219 = sphi 0, %s219
      %s221 = sphi 0, %s219
      %s222 = sphi 0, %s221
      %s236 = sphi 0, %s222
      %s240 = sphi 0, %s240
      %s242 = sphi 0, %s240
      %s243 = sphi 0, %s242
      %s257 = sphi 0, %s243
      %s261 = sphi 0, %s261
      %s263 = sphi 0, %s261
      %s264 = sphi 0, %s263
      %s278 = sphi 0, %s264
      %s282 = sphi 0, %s282
      %s284 = sphi 0, %s282
      %s285 = sphi 0, %s284
      %s299 = sphi 0, %s285
      %s303 = sphi 0, %s303
      %s305 = sphi 0, %s303
      %s306 = sphi 0, %s305
      %s320 = sphi 0, %s306
      %s324 = sphi 0, %s324
      %s326 = sphi 0, %s324
      %s327 = sphi 0, %s326
      %s341 = sphi 0, %s327
      %s345 = sphi 0, %s345
      %s347 = sphi 0, %s345
      %s348 = sphi 0, %s347
      %s362 = sphi 0, %s348
      %s366 = sphi 0, %s366
      %s368 = sphi 0, %s366
      %s369 = sphi 0, %s368
      %s383 = sphi 0, %s369
      %s389 = sphi 0, %s391
      %s392 = sphi 0, %s389
      %s393 = sphi 0, %s392
      %s409 = sphi 0, %s393
    $region4: #{tpu_custom_call.1} parent=1 // loop_header_branch
      %36 = sbr.rel (%p34) target = $region8
    $region5: #{tpu_custom_call.1} parent=1 // loop_body
      %s38 = ssub.s32 %s33, 1
      %s39 = ssub.s32 %s33, 2
      %s40 = sadd.s32 %s33, 1
      %s41 = ssub.s32 %s33, %s40
      %p42 = scmp.eq.s32.totalorder %s41, 0
      %s44 = sadd.s32 %s43, 1
      %s45 = scalar_select %p42, %s43, %s44
      %p48 = pneg %p42
      %p49 = scmp.eq.s32.totalorder %s33, 1
      %p50 = por %p48, %p49
      %p51 = scmp.ne.s32.totalorder %s43, %s46
      %p52 = scmp.eq.s32.totalorder %s33, 0
      %p53 = por %p51, %p52
      %p54 = scmp.ne.s32.totalorder %s43, %s46
      %p55 = scmp.eq.s32.totalorder %s38, 1
      %p56 = por %p54, %p55
      %p57 = scmp.ne.s32.totalorder %s46, %s47
      %p58 = scmp.eq.s32.totalorder %s38, 0
      %p59 = por %p57, %p58
      %p60 = scmp.ne.s32.totalorder %s46, %s47
      %p61 = scmp.eq.s32.totalorder %s39, 1
      %p62 = por %p60, %p61
      %p64 = scmp.ne.s32.totalorder %s47, %s63
      %p65 = scmp.eq.s32.totalorder %s39, 0
      %p66 = por %p64, %p65
      %s67 = ssub.s32 %s33, %s40
      %p68 = scmp.eq.s32.totalorder %s67, 0
      %s70 = sadd.s32 %s69, 1
      %s71 = scalar_select %p68, %s69, %s70
      %p74 = pneg %p68
      %p75 = scmp.eq.s32.totalorder %s33, 1
      %p76 = por %p74, %p75
      %p77 = scmp.ne.s32.totalorder %s69, %s72
      %p78 = scmp.eq.s32.totalorder %s33, 0
      %p79 = por %p77, %p78
      %p80 = scmp.ne.s32.totalorder %s69, %s72
      %p81 = scmp.eq.s32.totalorder %s38, 1
      %p82 = por %p80, %p81
      %p83 = scmp.ne.s32.totalorder %s72, %s73
      %p84 = scmp.eq.s32.totalorder %s38, 0
      %p85 = por %p83, %p84
      %p86 = scmp.ne.s32.totalorder %s72, %s73
      %p87 = scmp.eq.s32.totalorder %s39, 1
      %p88 = por %p86, %p87
      %p90 = scmp.ne.s32.totalorder %s73, %s89
      %p91 = scmp.eq.s32.totalorder %s39, 0
      %p92 = por %p90, %p91
      %s94 = sadd.s32 %s93, 1
      %p97 = scmp.eq.s32.totalorder %s33, 1
      %p98 = scmp.ne.s32.totalorder %s93, %s95
      %p99 = scmp.eq.s32.totalorder %s33, 0
      %p100 = por %p98, %p99
      %p101 = scmp.ne.s32.totalorder %s93, %s95
      %p102 = scmp.eq.s32.totalorder %s38, 1
      %p103 = por %p101, %p102
      %p104 = scmp.ne.s32.totalorder %s95, %s96
      %p105 = scmp.eq.s32.totalorder %s38, 0
      %p106 = por %p104, %p105
      %p107 = scmp.ne.s32.totalorder %s95, %s96
      %p108 = scmp.eq.s32.totalorder %s39, 1
      %p109 = por %p107, %p108
      %p111 = scmp.ne.s32.totalorder %s96, %s110
      %p112 = scmp.eq.s32.totalorder %s39, 0
      %p113 = por %p111, %p112
      %s115 = sadd.s32 %s114, 1
      %p118 = scmp.eq.s32.totalorder %s33, 1
      %p119 = scmp.ne.s32.totalorder %s114, %s116
      %p120 = scmp.eq.s32.totalorder %s33, 0
      %p121 = por %p119, %p120
      %p122 = scmp.ne.s32.totalorder %s114, %s116
      %p123 = scmp.eq.s32.totalorder %s38, 1
      %p124 = por %p122, %p123
      %p125 = scmp.ne.s32.totalorder %s116, %s117
      %p126 = scmp.eq.s32.totalorder %s38, 0
      %p127 = por %p125, %p126
      %p128 = scmp.ne.s32.totalorder %s116, %s117
      %p129 = scmp.eq.s32.totalorder %s39, 1
      %p130 = por %p128, %p129
      %p132 = scmp.ne.s32.totalorder %s117, %s131
      %p133 = scmp.eq.s32.totalorder %s39, 0
      %p134 = por %p132, %p133
      %s136 = sadd.s32 %s135, 1
      %p139 = scmp.eq.s32.totalorder %s33, 1
      %p140 = scmp.ne.s32.totalorder %s135, %s137
      %p141 = scmp.eq.s32.totalorder %s33, 0
      %p142 = por %p140, %p141
      %p143 = scmp.ne.s32.totalorder %s135, %s137
      %p144 = scmp.eq.s32.totalorder %s38, 1
      %p145 = por %p143, %p144
      %p146 = scmp.ne.s32.totalorder %s137, %s138
      %p147 = scmp.eq.s32.totalorder %s38, 0
      %p148 = por %p146, %p147
      %p149 = scmp.ne.s32.totalorder %s137, %s138
      %p150 = scmp.eq.s32.totalorder %s39, 1
      %p151 = por %p149, %p150
      %p153 = scmp.ne.s32.totalorder %s138, %s152
      %p154 = scmp.eq.s32.totalorder %s39, 0
      %p155 = por %p153, %p154
      %s157 = sadd.s32 %s156, 1
      %p160 = scmp.eq.s32.totalorder %s33, 1
      %p161 = scmp.ne.s32.totalorder %s156, %s158
      %p162 = scmp.eq.s32.totalorder %s33, 0
      %p163 = por %p161, %p162
      %p164 = scmp.ne.s32.totalorder %s156, %s158
      %p165 = scmp.eq.s32.totalorder %s38, 1
      %p166 = por %p164, %p165
      %p167 = scmp.ne.s32.totalorder %s158, %s159
      %p168 = scmp.eq.s32.totalorder %s38, 0
      %p169 = por %p167, %p168
      %p170 = scmp.ne.s32.totalorder %s158, %s159
      %p171 = scmp.eq.s32.totalorder %s39, 1
      %p172 = por %p170, %p171
      %p174 = scmp.ne.s32.totalorder %s159, %s173
      %p175 = scmp.eq.s32.totalorder %s39, 0
      %p176 = por %p174, %p175
      %s178 = sadd.s32 %s177, 1
      %p181 = scmp.eq.s32.totalorder %s33, 1
      %p182 = scmp.ne.s32.totalorder %s177, %s179
      %p183 = scmp.eq.s32.totalorder %s33, 0
      %p184 = por %p182, %p183
      %p185 = scmp.ne.s32.totalorder %s177, %s179
      %p186 = scmp.eq.s32.totalorder %s38, 1
      %p187 = por %p185, %p186
      %p188 = scmp.ne.s32.totalorder %s179, %s180
      %p189 = scmp.eq.s32.totalorder %s38, 0
      %p190 = por %p188, %p189
      %p191 = scmp.ne.s32.totalorder %s179, %s180
      %p192 = scmp.eq.s32.totalorder %s39, 1
      %p193 = por %p191, %p192
      %p195 = scmp.ne.s32.totalorder %s180, %s194
      %p196 = scmp.eq.s32.totalorder %s39, 0
      %p197 = por %p195, %p196
      %s199 = sadd.s32 %s198, 1
      %p202 = scmp.eq.s32.totalorder %s33, 1
      %p203 = scmp.ne.s32.totalorder %s198, %s200
      %p204 = scmp.eq.s32.totalorder %s33, 0
      %p205 = por %p203, %p204
      %p206 = scmp.ne.s32.totalorder %s198, %s200
      %p207 = scmp.eq.s32.totalorder %s38, 1
      %p208 = por %p206, %p207
      %p209 = scmp.ne.s32.totalorder %s200, %s201
      %p210 = scmp.eq.s32.totalorder %s38, 0
      %p211 = por %p209, %p210
      %p212 = scmp.ne.s32.totalorder %s200, %s201
      %p213 = scmp.eq.s32.totalorder %s39, 1
      %p214 = por %p212, %p213
      %p216 = scmp.ne.s32.totalorder %s201, %s215
      %p217 = scmp.eq.s32.totalorder %s39, 0
      %p218 = por %p216, %p217
      %s220 = sadd.s32 %s219, 1
      %p223 = scmp.eq.s32.totalorder %s33, 1
      %p224 = scmp.ne.s32.totalorder %s219, %s221
      %p225 = scmp.eq.s32.totalorder %s33, 0
      %p226 = por %p224, %p225
      %p227 = scmp.ne.s32.totalorder %s219, %s221
      %p228 = scmp.eq.s32.totalorder %s38, 1
      %p229 = por %p227, %p228
      %p230 = scmp.ne.s32.totalorder %s221, %s222
      %p231 = scmp.eq.s32.totalorder %s38, 0
      %p232 = por %p230, %p231
      %p233 = scmp.ne.s32.totalorder %s221, %s222
      %p234 = scmp.eq.s32.totalorder %s39, 1
      %p235 = por %p233, %p234
      %p237 = scmp.ne.s32.totalorder %s222, %s236
      %p238 = scmp.eq.s32.totalorder %s39, 0
      %p239 = por %p237, %p238
      %s241 = sadd.s32 %s240, 1
      %p244 = scmp.eq.s32.totalorder %s33, 1
      %p245 = scmp.ne.s32.totalorder %s240, %s242
      %p246 = scmp.eq.s32.totalorder %s33, 0
      %p247 = por %p245, %p246
      %p248 = scmp.ne.s32.totalorder %s240, %s242
      %p249 = scmp.eq.s32.totalorder %s38, 1
      %p250 = por %p248, %p249
      %p251 = scmp.ne.s32.totalorder %s242, %s243
      %p252 = scmp.eq.s32.totalorder %s38, 0
      %p253 = por %p251, %p252
      %p254 = scmp.ne.s32.totalorder %s242, %s243
      %p255 = scmp.eq.s32.totalorder %s39, 1
      %p256 = por %p254, %p255
      %p258 = scmp.ne.s32.totalorder %s243, %s257
      %p259 = scmp.eq.s32.totalorder %s39, 0
      %p260 = por %p258, %p259
      %s262 = sadd.s32 %s261, 1
      %p265 = scmp.eq.s32.totalorder %s33, 1
      %p266 = scmp.ne.s32.totalorder %s261, %s263
      %p267 = scmp.eq.s32.totalorder %s33, 0
      %p268 = por %p266, %p267
      %p269 = scmp.ne.s32.totalorder %s261, %s263
      %p270 = scmp.eq.s32.totalorder %s38, 1
      %p271 = por %p269, %p270
      %p272 = scmp.ne.s32.totalorder %s263, %s264
      %p273 = scmp.eq.s32.totalorder %s38, 0
      %p274 = por %p272, %p273
      %p275 = scmp.ne.s32.totalorder %s263, %s264
      %p276 = scmp.eq.s32.totalorder %s39, 1
      %p277 = por %p275, %p276
      %p279 = scmp.ne.s32.totalorder %s264, %s278
      %p280 = scmp.eq.s32.totalorder %s39, 0
      %p281 = por %p279, %p280
      %s283 = sadd.s32 %s282, 1
      %p286 = scmp.eq.s32.totalorder %s33, 1
      %p287 = scmp.ne.s32.totalorder %s282, %s284
      %p288 = scmp.eq.s32.totalorder %s33, 0
      %p289 = por %p287, %p288
      %p290 = scmp.ne.s32.totalorder %s282, %s284
      %p291 = scmp.eq.s32.totalorder %s38, 1
      %p292 = por %p290, %p291
      %p293 = scmp.ne.s32.totalorder %s284, %s285
      %p294 = scmp.eq.s32.totalorder %s38, 0
      %p295 = por %p293, %p294
      %p296 = scmp.ne.s32.totalorder %s284, %s285
      %p297 = scmp.eq.s32.totalorder %s39, 1
      %p298 = por %p296, %p297
      %p300 = scmp.ne.s32.totalorder %s285, %s299
      %p301 = scmp.eq.s32.totalorder %s39, 0
      %p302 = por %p300, %p301
      %s304 = sadd.s32 %s303, 1
      %p307 = scmp.eq.s32.totalorder %s33, 1
      %p308 = scmp.ne.s32.totalorder %s303, %s305
      %p309 = scmp.eq.s32.totalorder %s33, 0
      %p310 = por %p308, %p309
      %p311 = scmp.ne.s32.totalorder %s303, %s305
      %p312 = scmp.eq.s32.totalorder %s38, 1
      %p313 = por %p311, %p312
      %p314 = scmp.ne.s32.totalorder %s305, %s306
      %p315 = scmp.eq.s32.totalorder %s38, 0
      %p316 = por %p314, %p315
      %p317 = scmp.ne.s32.totalorder %s305, %s306
      %p318 = scmp.eq.s32.totalorder %s39, 1
      %p319 = por %p317, %p318
      %p321 = scmp.ne.s32.totalorder %s306, %s320
      %p322 = scmp.eq.s32.totalorder %s39, 0
      %p323 = por %p321, %p322
      %s325 = sadd.s32 %s324, 1
      %p328 = scmp.eq.s32.totalorder %s33, 1
      %p329 = scmp.ne.s32.totalorder %s324, %s326
      %p330 = scmp.eq.s32.totalorder %s33, 0
      %p331 = por %p329, %p330
      %p332 = scmp.ne.s32.totalorder %s324, %s326
      %p333 = scmp.eq.s32.totalorder %s38, 1
      %p334 = por %p332, %p333
      %p335 = scmp.ne.s32.totalorder %s326, %s327
      %p336 = scmp.eq.s32.totalorder %s38, 0
      %p337 = por %p335, %p336
      %p338 = scmp.ne.s32.totalorder %s326, %s327
      %p339 = scmp.eq.s32.totalorder %s39, 1
      %p340 = por %p338, %p339
      %p342 = scmp.ne.s32.totalorder %s327, %s341
      %p343 = scmp.eq.s32.totalorder %s39, 0
      %p344 = por %p342, %p343
      %s346 = sadd.s32 %s345, 1
      %p349 = scmp.eq.s32.totalorder %s33, 1
      %p350 = scmp.ne.s32.totalorder %s345, %s347
      %p351 = scmp.eq.s32.totalorder %s33, 0
      %p352 = por %p350, %p351
      %p353 = scmp.ne.s32.totalorder %s345, %s347
      %p354 = scmp.eq.s32.totalorder %s38, 1
      %p355 = por %p353, %p354
      %p356 = scmp.ne.s32.totalorder %s347, %s348
      %p357 = scmp.eq.s32.totalorder %s38, 0
      %p358 = por %p356, %p357
      %p359 = scmp.ne.s32.totalorder %s347, %s348
      %p360 = scmp.eq.s32.totalorder %s39, 1
      %p361 = por %p359, %p360
      %p363 = scmp.ne.s32.totalorder %s348, %s362
      %p364 = scmp.eq.s32.totalorder %s39, 0
      %p365 = por %p363, %p364
      %s367 = sadd.s32 %s366, 1
      %p370 = scmp.eq.s32.totalorder %s33, 1
      %p371 = scmp.ne.s32.totalorder %s366, %s368
      %p372 = scmp.eq.s32.totalorder %s33, 0
      %p373 = por %p371, %p372
      %p374 = scmp.ne.s32.totalorder %s366, %s368
      %p375 = scmp.eq.s32.totalorder %s38, 1
      %p376 = por %p374, %p375
      %p377 = scmp.ne.s32.totalorder %s368, %s369
      %p378 = scmp.eq.s32.totalorder %s38, 0
      %p379 = por %p377, %p378
      %p380 = scmp.ne.s32.totalorder %s368, %s369
      %p381 = scmp.eq.s32.totalorder %s39, 1
      %p382 = por %p380, %p381
      %p384 = scmp.ne.s32.totalorder %s369, %s383
      %p385 = scmp.eq.s32.totalorder %s39, 0
      %p386 = por %p384, %p385
      %s387 = ssub.s32 %s33, %s40
      %p388 = scmp.eq.s32.totalorder %s387, 0
      %s390 = sadd.s32 %s389, 1
      %s391 = scalar_select %p388, %s389, %s390
      %p394 = pneg %p388
      %p395 = scmp.eq.s32.totalorder %s33, 1
      %p396 = por %p394, %p395
      %p397 = scmp.ne.s32.totalorder %s389, %s392
      %p398 = scmp.eq.s32.totalorder %s33, 0
      %p399 = por %p397, %p398
      %p400 = scmp.ne.s32.totalorder %s389, %s392
      %p401 = scmp.eq.s32.totalorder %s38, 1
      %p402 = por %p400, %p401
      %p403 = scmp.ne.s32.totalorder %s392, %s393
      %p404 = scmp.eq.s32.totalorder %s38, 0
      %p405 = por %p403, %p404
      %p406 = scmp.ne.s32.totalorder %s392, %s393
      %p407 = scmp.eq.s32.totalorder %s39, 1
      %p408 = por %p406, %p407
      %p410 = scmp.ne.s32.totalorder %s393, %s409
      %p411 = scmp.eq.s32.totalorder %s39, 0
      %p412 = por %p410, %p411
      %p413 = scmp.le.s32.totalorder 1, %s33
      %p414 = scmp.lt.s32.totalorder %s33, 3
      %p415 = pnand %p413, %p414
      %p416 = pneg %p415
      // Predicated region
      $region9: #{tpu_custom_call.1} parent=5 // pred_check
        _
      $region10: #{tpu_custom_call.1} parent=5 // pred_check_branch
        %418 = sbr.rel (%p415) target = $region12
      $region11: #{tpu_custom_call.1} parent=5 // pred_region
        %s419 = ssub.s32 %s33, 1
        // Predicated region
        $region13: #{tpu_custom_call.1} parent=11 // pred_check
          %p420 = pneg %p106
        $region14: #{tpu_custom_call.1} parent=11 // pred_check_branch
          %422 = sbr.rel (%p420) target = $region16
        $region15: #{tpu_custom_call.1} parent=11 // pred_region
          _
        $region16: #{tpu_custom_call.1} parent=11 // pred_fallthru
          _
        // Predicated region
        $region17: #{tpu_custom_call.1} parent=11 // pred_check
          %p423 = pneg %p127
        $region18: #{tpu_custom_call.1} parent=11 // pred_check_branch
          %425 = sbr.rel (%p423) target = $region20
        $region19: #{tpu_custom_call.1} parent=11 // pred_region
          %s427 = ssub.s32 16, 16
          %428 = vsyncadd [#allocation6], %s427
          %s430 = sshll.u32 [#allocation7], 4
          %s431 = int_to_ptr.vmem [resolvable:$true] %s430
          %433 = dma.hbm_to_vmem [thread:$0]  %s3, 16, %s431, [#allocation6]
        $region20: #{tpu_custom_call.1} parent=11 // pred_fallthru
          _
        // Predicated region
        $region21: #{tpu_custom_call.1} parent=11 // pred_check
          %p434 = pneg %p148
        $region22: #{tpu_custom_call.1} parent=11 // pred_check_branch
          %436 = sbr.rel (%p434) target = $region24
        $region23: #{tpu_custom_call.1} parent=11 // pred_region
          %s438 = ssub.s32 6144, 6144
          %439 = vsyncadd [#allocation9], %s438
          %s440 = sshll.u32 [#allocation8], 4
          %s441 = int_to_ptr.vmem [resolvable:$true] %s440
          %446 = dma.hbm_to_vmem [thread:$0]  %s4, 6144, %s441, [#allocation9], 384, 384, 24
        $region24: #{tpu_custom_call.1} parent=11 // pred_fallthru
          _
        // Predicated region
        $region25: #{tpu_custom_call.1} parent=11 // pred_check
          %p447 = pneg %p169
        $region26: #{tpu_custom_call.1} parent=11 // pred_check_branch
          %449 = sbr.rel (%p447) target = $region28
        $region27: #{tpu_custom_call.1} parent=11 // pred_region
          _
        $region28: #{tpu_custom_call.1} parent=11 // pred_fallthru
          _
        // Predicated region
        $region29: #{tpu_custom_call.1} parent=11 // pred_check
          %p450 = pneg %p190
        $region30: #{tpu_custom_call.1} parent=11 // pred_check_branch
          %452 = sbr.rel (%p450) target = $region32
        $region31: #{tpu_custom_call.1} parent=11 // pred_region
          %s454 = ssub.s32 2048, 2048
          %455 = vsyncadd [#allocation9], %s454
          %s456 = sshll.u32 [#allocation10], 4
          %s457 = int_to_ptr.vmem [resolvable:$true] %s456
          %462 = dma.hbm_to_vmem [thread:$0]  %s6, 2048, %s457, [#allocation9], 64, 64, 4
        $region32: #{tpu_custom_call.1} parent=11 // pred_fallthru
          _
        // Predicated region
        $region33: #{tpu_custom_call.1} parent=11 // pred_check
          %p463 = pneg %p211
        $region34: #{tpu_custom_call.1} parent=11 // pred_check_branch
          %465 = sbr.rel (%p463) target = $region36
        $region35: #{tpu_custom_call.1} parent=11 // pred_region
          _
        $region36: #{tpu_custom_call.1} parent=11 // pred_fallthru
          _
        // Predicated region
        $region37: #{tpu_custom_call.1} parent=11 // pred_check
          %p466 = pneg %p232
        $region38: #{tpu_custom_call.1} parent=11 // pred_check_branch
          %468 = sbr.rel (%p466) target = $region40
        $region39: #{tpu_custom_call.1} parent=11 // pred_region
          _
        $region40: #{tpu_custom_call.1} parent=11 // pred_fallthru
          _
        // Predicated region
        $region41: #{tpu_custom_call.1} parent=11 // pred_check
          %p469 = pneg %p253
        $region42: #{tpu_custom_call.1} parent=11 // pred_check_branch
          %471 = sbr.rel (%p469) target = $region44
        $region43: #{tpu_custom_call.1} parent=11 // pred_region
          _
        $region44: #{tpu_custom_call.1} parent=11 // pred_fallthru
          _
        // Predicated region
        $region45: #{tpu_custom_call.1} parent=11 // pred_check
          %p472 = pneg %p274
        $region46: #{tpu_custom_call.1} parent=11 // pred_check_branch
          %474 = sbr.rel (%p472) target = $region48
        $region47: #{tpu_custom_call.1} parent=11 // pred_region
          %s476 = ssub.s32 2048, 2048
          %477 = vsyncadd [#allocation12], %s476
          %s478 = sshll.u32 [#allocation11], 4
          %s479 = int_to_ptr.vmem [resolvable:$true] %s478
          %484 = dma.hbm_to_vmem [thread:$0]  %s10, 2048, %s479, [#allocation12], 128, 128, 8
        $region48: #{tpu_custom_call.1} parent=11 // pred_fallthru
          _
        // Predicated region
        $region49: #{tpu_custom_call.1} parent=11 // pred_check
          %p485 = pneg %p295
        $region50: #{tpu_custom_call.1} parent=11 // pred_check_branch
          %487 = sbr.rel (%p485) target = $region52
        $region51: #{tpu_custom_call.1} parent=11 // pred_region
          _
        $region52: #{tpu_custom_call.1} parent=11 // pred_fallthru
          _
        // Predicated region
        $region53: #{tpu_custom_call.1} parent=11 // pred_check
          %p488 = pneg %p316
        $region54: #{tpu_custom_call.1} parent=11 // pred_check_branch
          %490 = sbr.rel (%p488) target = $region56
        $region55: #{tpu_custom_call.1} parent=11 // pred_region
          %s492 = ssub.s32 2048, 2048
          %493 = vsyncadd [#allocation12], %s492
          %s494 = sshll.u32 [#allocation13], 4
          %s495 = int_to_ptr.vmem [resolvable:$true] %s494
          %500 = dma.hbm_to_vmem [thread:$0]  %s12, 2048, %s495, [#allocation12], 64, 64, 4
        $region56: #{tpu_custom_call.1} parent=11 // pred_fallthru
          _
        // Predicated region
        $region57: #{tpu_custom_call.1} parent=11 // pred_check
          %p501 = pneg %p337
        $region58: #{tpu_custom_call.1} parent=11 // pred_check_branch
          %503 = sbr.rel (%p501) target = $region60
        $region59: #{tpu_custom_call.1} parent=11 // pred_region
          _
        $region60: #{tpu_custom_call.1} parent=11 // pred_fallthru
          _
        // Predicated region
        $region61: #{tpu_custom_call.1} parent=11 // pred_check
          %p504 = pneg %p358
        $region62: #{tpu_custom_call.1} parent=11 // pred_check_branch
          %506 = sbr.rel (%p504) target = $region64
        $region63: #{tpu_custom_call.1} parent=11 // pred_region
          _
        $region64: #{tpu_custom_call.1} parent=11 // pred_fallthru
          _
        // Predicated region
        $region65: #{tpu_custom_call.1} parent=11 // pred_check
          %p507 = pneg %p379
        $region66: #{tpu_custom_call.1} parent=11 // pred_check_branch
          %509 = sbr.rel (%p507) target = $region68
        $region67: #{tpu_custom_call.1} parent=11 // pred_region
          _
        $region68: #{tpu_custom_call.1} parent=11 // pred_fallthru
          _
      $region12: #{tpu_custom_call.1} parent=5 // pred_fallthru
        _
      %p510 = scmp.lt.s32.totalorder %s33, 2
      // Predicated region
      $region69: #{tpu_custom_call.1} parent=5 // pred_check
        %p511 = pneg %p510
      $region70: #{tpu_custom_call.1} parent=5 // pred_check_branch
        %513 = sbr.rel (%p511) target = $region72
      $region71: #{tpu_custom_call.1} parent=5 // pred_region
        // Predicated region
        $region73: #{tpu_custom_call.1} parent=71 // pred_check
          %p514 = pneg %p53
        $region74: #{tpu_custom_call.1} parent=71 // pred_check_branch
          %516 = sbr.rel (%p514) target = $region76
        $region75: #{tpu_custom_call.1} parent=71 // pred_region
          %s517 = sand.u32 %s43, 1
          %s518 = scalar_lea.sflag [#allocation3], %s517
          %s519 = sand.u32 %s43, 1
          %s520 = smul.addr %s519, 8
          %s521 = scalar_lea.vmem [#allocation2], %s520
          %s522 = smul.u32 2, %s33
          %s524 = ssub.s32 128, 128
          %525 = vsyncadd %s518, %s524
          %s526 = smul.addr %s522, 64
          %s527 = scalar_lea.hbm %s0, %s526
          %s528 = sshll.u32 %s521, 4
          %s529 = int_to_ptr.vmem [resolvable:$true] %s528
          %534 = dma.hbm_to_vmem [thread:$0]  %s527, 128, %s529, %s518, 64, 64, 4
        $region76: #{tpu_custom_call.1} parent=71 // pred_fallthru
          _
        // Predicated region
        $region77: #{tpu_custom_call.1} parent=71 // pred_check
          %p535 = pneg %p79
        $region78: #{tpu_custom_call.1} parent=71 // pred_check_branch
          %537 = sbr.rel (%p535) target = $region80
        $region79: #{tpu_custom_call.1} parent=71 // pred_region
          %s538 = sand.u32 %s33, 1
          %s539 = scalar_lea.sflag [#allocation6], %s538
          %s540 = sand.u32 %s69, 1
          %s541 = scalar_lea.vmem [#allocation5], %s540
          %s543 = ssub.s32 16, 16
          %544 = vsyncadd %s539, %s543
          %s545 = smul.addr %s33, 16
          %s546 = scalar_lea.hbm %s1, %s545
          %s548 = sshll.u32 %s541, 4
          %s549 = int_to_ptr.vmem [resolvable:$true] %s548
          %551 = dma.hbm_to_vmem [thread:$0]  %s546, 16, %s549, %s539
        $region80: #{tpu_custom_call.1} parent=71 // pred_fallthru
          _
      $region72: #{tpu_custom_call.1} parent=5 // pred_fallthru
        _
      %p552 = scmp.le.s32.totalorder 1, %s33
      %p553 = scmp.lt.s32.totalorder %s33, 3
      %p554 = pnand %p552, %p553
      %p555 = pneg %p554
      // Predicated region
      $region81: #{tpu_custom_call.1} parent=5 // pred_check
        _
      $region82: #{tpu_custom_call.1} parent=5 // pred_check_branch
        %557 = sbr.rel (%p554) target = $region84
      $region83: #{tpu_custom_call.1} parent=5 // pred_region
        %s558 = ssub.s32 %s33, 1
        %s559 = sand.u32 %s46, 1
        %s560 = scalar_lea.sflag [#allocation3], %s559
        %s561 = sand.u32 %s46, 1
        %s562 = smul.addr %s561, 8
        %s563 = scalar_lea.vmem [#allocation2], %s562
        // Predicated region
        $region85: #{tpu_custom_call.1} parent=83 // pred_check
          %p564 = pneg %p59
        $region86: #{tpu_custom_call.1} parent=83 // pred_check_branch
          %566 = sbr.rel (%p564) target = $region88
        $region87: #{tpu_custom_call.1} parent=83 // pred_region
          %567 = dma.done %s560, 128
        $region88: #{tpu_custom_call.1} parent=83 // pred_fallthru
          _
        %s568 = sand.u32 %s38, 1
        %s569 = scalar_lea.sflag [#allocation6], %s568
        %s570 = sand.u32 %s72, 1
        %s571 = scalar_lea.vmem [#allocation5], %s570
        // Predicated region
        $region89: #{tpu_custom_call.1} parent=83 // pred_check
          %p572 = pneg %p85
        $region90: #{tpu_custom_call.1} parent=83 // pred_check_branch
          %574 = sbr.rel (%p572) target = $region92
        $region91: #{tpu_custom_call.1} parent=83 // pred_region
          %575 = dma.done %s569, 16
        $region92: #{tpu_custom_call.1} parent=83 // pred_fallthru
          _
        // Predicated region
        $region93: #{tpu_custom_call.1} parent=83 // pred_check
          %p576 = pneg %p127
        $region94: #{tpu_custom_call.1} parent=83 // pred_check_branch
          %578 = sbr.rel (%p576) target = $region96
        $region95: #{tpu_custom_call.1} parent=83 // pred_region
          %579 = dma.done [#allocation6], 16
        $region96: #{tpu_custom_call.1} parent=83 // pred_fallthru
          _
        // Predicated region
        $region97: #{tpu_custom_call.1} parent=83 // pred_check
          %p580 = pneg %p148
        $region98: #{tpu_custom_call.1} parent=83 // pred_check_branch
          %582 = sbr.rel (%p580) target = $region100
        $region99: #{tpu_custom_call.1} parent=83 // pred_region
          %583 = dma.done [#allocation9], 6144
        $region100: #{tpu_custom_call.1} parent=83 // pred_fallthru
          _
        // Predicated region
        $region101: #{tpu_custom_call.1} parent=83 // pred_check
          %p584 = pneg %p190
        $region102: #{tpu_custom_call.1} parent=83 // pred_check_branch
          %586 = sbr.rel (%p584) target = $region104
        $region103: #{tpu_custom_call.1} parent=83 // pred_region
          %587 = dma.done [#allocation9], 2048
        $region104: #{tpu_custom_call.1} parent=83 // pred_fallthru
          _
        // Predicated region
        $region105: #{tpu_custom_call.1} parent=83 // pred_check
          %p588 = pneg %p274
        $region106: #{tpu_custom_call.1} parent=83 // pred_check_branch
          %590 = sbr.rel (%p588) target = $region108
        $region107: #{tpu_custom_call.1} parent=83 // pred_region
          %591 = dma.done [#allocation12], 2048
        $region108: #{tpu_custom_call.1} parent=83 // pred_fallthru
          _
        // Predicated region
        $region109: #{tpu_custom_call.1} parent=83 // pred_check
          %p592 = pneg %p316
        $region110: #{tpu_custom_call.1} parent=83 // pred_check_branch
          %594 = sbr.rel (%p592) target = $region112
        $region111: #{tpu_custom_call.1} parent=83 // pred_region
          %595 = dma.done [#allocation12], 2048
        $region112: #{tpu_custom_call.1} parent=83 // pred_fallthru
          _
        %s596 = sand.u32 %s46, 1
        %s597 = scalar_lea.sflag [#allocation3], %s596
        %s598 = sand.u32 %s46, 1
        %s599 = smul.addr %s598, 8
        %s600 = scalar_lea.vmem [#allocation2], %s599
        %p601 = pneg %p59
        %p602 = pneg %p56
        %s603 = sand.u32 %s38, 1
        %s604 = scalar_lea.sflag [#allocation6], %s603
        %s605 = sand.u32 %s72, 1
        %s606 = scalar_lea.vmem [#allocation5], %s605
        %p607 = pneg %p85
        %p608 = pneg %p82
        %p609 = pneg %p106
        %p610 = pneg %p103
        %p611 = pneg %p127
        %p612 = pneg %p124
        %p613 = pneg %p148
        %p614 = pneg %p145
        %p615 = pneg %p169
        %p616 = pneg %p166
        %p617 = pneg %p190
        %p618 = pneg %p187
        %p619 = pneg %p211
        %p620 = pneg %p208
        %p621 = pneg %p232
        %p622 = pneg %p229
        %p623 = pneg %p253
        %p624 = pneg %p250
        %p625 = pneg %p274
        %p626 = pneg %p271
        %p627 = pneg %p295
        %p628 = pneg %p292
        %p629 = pneg %p316
        %p630 = pneg %p313
        %p631 = pneg %p337
        %p632 = pneg %p334
        %p633 = pneg %p358
        %p634 = pneg %p355
        %p635 = pneg %p379
        %p636 = pneg %p376
        %p637 = pneg %p405
        %p638 = pneg %p402
        %s639 = sand.u32 %s392, 1
        %s640 = scalar_lea.sflag [#allocation4], %s639
        %s641 = sand.u32 %s392, 1
        %s642 = smul.addr %s641, 8
        %s643 = scalar_lea.vmem [#allocation14], %s642
        %s644 = smul.u32 2, %s38
        %s645 = smul.u32 2, %s38
        %v647 = vld [vmem:[%s563] sm:$0xf]
        %v648 = vld [vmem:[%s563 + $0x4] sm:$0xf]
        %v649 = vunpack.c.l.bf16 %v647
        %v650 = vunpack.c.l.bf16 %v648
        %v651 = vld [vmem:[%s2] sm:$0x1]
        %v652 = vld [vmem:[#allocation7] sm:$0x1]
        %653 = vadd.xlane.f32.xlu0 %v649
        %v654 = vpop.xlane.xlu0 %653
        %655 = vadd.xlane.f32.xlu0 %v650
        %v656 = vpop.xlane.xlu0 %655
        %v657 = vrcp.pop 128.0
        %v658 = vmul.f32 %v654, %v657
        %v659 = vmul.f32 %v656, %v657
        %v660 = vsub.f32 %v649, %v658
        %v661 = vsub.f32 %v650, %v659
        %v662 = vmul.f32 %v660, %v660
        %v663 = vmul.f32 %v661, %v661
        %664 = vadd.xlane.f32.xlu0 %v662
        %v665 = vpop.xlane.xlu0 %664
        %666 = vadd.xlane.f32.xlu0 %v663
        %v667 = vpop.xlane.xlu0 %666
        %v668 = vmul.f32 %v665, %v657
        %v669 = vmul.f32 %v667, %v657
        %v670 = vadd.f32 %v668, 1e-12
        %v671 = vadd.f32 %v669, 1e-12
        %v672 = vrsqrt.pop %v670
        %v673 = vrsqrt.pop %v671
        %v674 = vmul.f32 %v660, %v672
        %v675 = vmul.f32 %v661, %v673
        %v677 = vlaneseq
        %v678 = vshrl.u32 %v677, 7
        %v679 = vsub.s32 0, %v678
        %v680 = vrot.slane %v651, %v679
        %v682 = vmul.f32 %v674, %v680
        %v683 = vmul.f32 %v675, %v680
        %v685 = vlaneseq
        %v686 = vshrl.u32 %v685, 7
        %v687 = vsub.s32 0, %v686
        %v688 = vrot.slane %v652, %v687
        %v690 = vadd.f32 %v682, %v688
        %v691 = vadd.f32 %v683, %v688
        %v692 = vpack.c.bf16 %v691, %v690
        %v693 = vld [vmem:[%s571] sm:$0x1]
        %v694 = vld [vmem:[#allocation8] sm:$0xff]
        %v695 = vld [vmem:[#allocation8 + $0x8] sm:$0xff]
        %v696 = vld [vmem:[#allocation8 + $0x10] sm:$0xff]
        %v697 = vld [vmem:[#allocation8 + $0x18] sm:$0xff]
        %v698 = vld [vmem:[#allocation8 + $0x20] sm:$0xff]
        %v699 = vld [vmem:[#allocation8 + $0x28] sm:$0xff]
        %v700 = vld [vmem:[#allocation8 + $0x30] sm:$0xff]
        %v701 = vld [vmem:[#allocation8 + $0x38] sm:$0xff]
        %v702 = vld [vmem:[#allocation8 + $0x40] sm:$0xff]
        %v703 = vld [vmem:[#allocation8 + $0x48] sm:$0xff]
        %v704 = vld [vmem:[#allocation8 + $0x50] sm:$0xff]
        %v705 = vld [vmem:[#allocation8 + $0x58] sm:$0xff]
        %v706 = vld [vmem:[#allocation8 + $0x60] sm:$0xff]
        %v707 = vld [vmem:[#allocation8 + $0x68] sm:$0xff]
        %v708 = vld [vmem:[#allocation8 + $0x70] sm:$0xff]
        %v709 = vld [vmem:[#allocation8 + $0x78] sm:$0xff]
        %v710 = vld [vmem:[#allocation8 + $0x80] sm:$0xff]
        %v711 = vld [vmem:[#allocation8 + $0x88] sm:$0xff]
        %v712 = vld [vmem:[#allocation8 + $0x90] sm:$0xff]
        %v713 = vld [vmem:[#allocation8 + $0x98] sm:$0xff]
        %v714 = vld [vmem:[#allocation8 + $0xa0] sm:$0xff]
        %v715 = vld [vmem:[#allocation8 + $0xa8] sm:$0xff]
        %v716 = vld [vmem:[#allocation8 + $0xb0] sm:$0xff]
        %v717 = vld [vmem:[#allocation8 + $0xb8] sm:$0xff]
        %v718 = vld [vmem:[#allocation8 + $0xc0] sm:$0xff]
        %v719 = vld [vmem:[#allocation8 + $0xc8] sm:$0xff]
        %v720 = vld [vmem:[#allocation8 + $0xd0] sm:$0xff]
        %v721 = vld [vmem:[#allocation8 + $0xd8] sm:$0xff]
        %v722 = vld [vmem:[#allocation8 + $0xe0] sm:$0xff]
        %v723 = vld [vmem:[#allocation8 + $0xe8] sm:$0xff]
        %v724 = vld [vmem:[#allocation8 + $0xf0] sm:$0xff]
        %v725 = vld [vmem:[#allocation8 + $0xf8] sm:$0xff]
        %v726 = vld [vmem:[#allocation8 + $0x100] sm:$0xff]
        %v727 = vld [vmem:[#allocation8 + $0x108] sm:$0xff]
        %v728 = vld [vmem:[#allocation8 + $0x110] sm:$0xff]
        %v729 = vld [vmem:[#allocation8 + $0x118] sm:$0xff]
        %v730 = vld [vmem:[#allocation8 + $0x120] sm:$0xff]
        %v731 = vld [vmem:[#allocation8 + $0x128] sm:$0xff]
        %v732 = vld [vmem:[#allocation8 + $0x130] sm:$0xff]
        %v733 = vld [vmem:[#allocation8 + $0x138] sm:$0xff]
        %v734 = vld [vmem:[#allocation8 + $0x140] sm:$0xff]
        %v735 = vld [vmem:[#allocation8 + $0x148] sm:$0xff]
        %v736 = vld [vmem:[#allocation8 + $0x150] sm:$0xff]
        %v737 = vld [vmem:[#allocation8 + $0x158] sm:$0xff]
        %v738 = vld [vmem:[#allocation8 + $0x160] sm:$0xff]
        %v739 = vld [vmem:[#allocation8 + $0x168] sm:$0xff]
        %v740 = vld [vmem:[#allocation8 + $0x170] sm:$0xff]
        %v741 = vld [vmem:[#allocation8 + $0x178] sm:$0xff]
        %v742 = vld [vmem:[%s5] sm:$0x3f]
        %v744 = vlaneseq
        %v745 = vshrl.u32 %v744, 7
        %v746 = vsub.s32 0, %v745
        %v747 = vrot.slane %v742, %v746
        %v748 = vlaneseq
        %v749 = vshrl.u32 %v748, 7
        %v750 = vsub.s32 1, %v749
        %v751 = vrot.slane %v742, %v750
        %v752 = vlaneseq
        %v753 = vshrl.u32 %v752, 7
        %v754 = vsub.s32 2, %v753
        %v755 = vrot.slane %v742, %v754
        %v756 = vlaneseq
        %v757 = vshrl.u32 %v756, 7
        %v758 = vsub.s32 3, %v757
        %v759 = vrot.slane %v742, %v758
        %v760 = vlaneseq
        %v761 = vshrl.u32 %v760, 7
        %v762 = vsub.s32 4, %v761
        %v763 = vrot.slane %v742, %v762
        %v764 = vlaneseq
        %v765 = vshrl.u32 %v764, 7
        %v766 = vsub.s32 5, %v765
        %v767 = vrot.slane %v742, %v766
        %v822 = vunpack.c.l.b16 %v694
        %v823 = vunpack.c.h.b16 %v694
        %v824 = vunpack.c.l.b16 %v695
        %v825 = vunpack.c.h.b16 %v695
        %v826 = vunpack.c.l.b16 %v696
        %v827 = vunpack.c.h.b16 %v696
        %v828 = vunpack.c.l.b16 %v697
        %v829 = vunpack.c.h.b16 %v697
        %v830 = vunpack.c.l.b16 %v698
        %v831 = vunpack.c.h.b16 %v698
        %v832 = vunpack.c.l.b16 %v699
        %v833 = vunpack.c.h.b16 %v699
        %v834 = vunpack.c.l.b16 %v700
        %v835 = vunpack.c.h.b16 %v700
        %v836 = vunpack.c.l.b16 %v701
        %v837 = vunpack.c.h.b16 %v701
        %v838 = vunpack.c.l.b16 %v702
        %v839 = vunpack.c.h.b16 %v702
        %v840 = vunpack.c.l.b16 %v703
        %v841 = vunpack.c.h.b16 %v703
        %v842 = vunpack.c.l.b16 %v704
        %v843 = vunpack.c.h.b16 %v704
        %v844 = vunpack.c.l.b16 %v705
        %v845 = vunpack.c.h.b16 %v705
        %v846 = vunpack.c.l.b16 %v706
        %v847 = vunpack.c.h.b16 %v706
        %v848 = vunpack.c.l.b16 %v707
        %v849 = vunpack.c.h.b16 %v707
        %v850 = vunpack.c.l.b16 %v708
        %v851 = vunpack.c.h.b16 %v708
        %v852 = vunpack.c.l.b16 %v709
        %v853 = vunpack.c.h.b16 %v709
        %v854 = vunpack.c.l.b16 %v710
        %v855 = vunpack.c.h.b16 %v710
        %v856 = vunpack.c.l.b16 %v711
        %v857 = vunpack.c.h.b16 %v711
        %v858 = vunpack.c.l.b16 %v712
        %v859 = vunpack.c.h.b16 %v712
        %v860 = vunpack.c.l.b16 %v713
        %v861 = vunpack.c.h.b16 %v713
        %v862 = vunpack.c.l.b16 %v714
        %v863 = vunpack.c.h.b16 %v714
        %v864 = vunpack.c.l.b16 %v715
        %v865 = vunpack.c.h.b16 %v715
        %v866 = vunpack.c.l.b16 %v716
        %v867 = vunpack.c.h.b16 %v716
        %v868 = vunpack.c.l.b16 %v717
        %v869 = vunpack.c.h.b16 %v717
        %v870 = vunpack.c.l.b16 %v718
        %v871 = vunpack.c.h.b16 %v718
        %v872 = vunpack.c.l.b16 %v719
        %v873 = vunpack.c.h.b16 %v719
        %v874 = vunpack.c.l.b16 %v720
        %v875 = vunpack.c.h.b16 %v720
        %v876 = vunpack.c.l.b16 %v721
        %v877 = vunpack.c.h.b16 %v721
        %v878 = vunpack.c.l.b16 %v722
        %v879 = vunpack.c.h.b16 %v722
        %v880 = vunpack.c.l.b16 %v723
        %v881 = vunpack.c.h.b16 %v723
        %v882 = vunpack.c.l.b16 %v724
        %v883 = vunpack.c.h.b16 %v724
        %v884 = vunpack.c.l.b16 %v725
        %v885 = vunpack.c.h.b16 %v725
        %v886 = vunpack.c.l.b16 %v726
        %v887 = vunpack.c.h.b16 %v726
        %v888 = vunpack.c.l.b16 %v727
        %v889 = vunpack.c.h.b16 %v727
        %v890 = vunpack.c.l.b16 %v728
        %v891 = vunpack.c.h.b16 %v728
        %v892 = vunpack.c.l.b16 %v729
        %v893 = vunpack.c.h.b16 %v729
        %v894 = vunpack.c.l.b16 %v730
        %v895 = vunpack.c.h.b16 %v730
        %v896 = vunpack.c.l.b16 %v731
        %v897 = vunpack.c.h.b16 %v731
        %v898 = vunpack.c.l.b16 %v732
        %v899 = vunpack.c.h.b16 %v732
        %v900 = vunpack.c.l.b16 %v733
        %v901 = vunpack.c.h.b16 %v733
        %v902 = vunpack.c.l.b16 %v734
        %v903 = vunpack.c.h.b16 %v734
        %v904 = vunpack.c.l.b16 %v735
        %v905 = vunpack.c.h.b16 %v735
        %v906 = vunpack.c.l.b16 %v736
        %v907 = vunpack.c.h.b16 %v736
        %v908 = vunpack.c.l.b16 %v737
        %v909 = vunpack.c.h.b16 %v737
        %v910 = vunpack.c.l.b16 %v738
        %v911 = vunpack.c.h.b16 %v738
        %v912 = vunpack.c.l.b16 %v739
        %v913 = vunpack.c.h.b16 %v739
        %v914 = vunpack.c.l.b16 %v740
        %v915 = vunpack.c.h.b16 %v740
        %v916 = vunpack.c.l.b16 %v741
        %v917 = vunpack.c.h.b16 %v741
        %v918 = vpack.c.b16 %v828, %v822
        %v919 = vpack.c.b16 %v829, %v823
        %v920 = vpack.c.b16 %v830, %v824
        %v921 = vpack.c.b16 %v831, %v825
        %v922 = vpack.c.b16 %v832, %v826
        %v923 = vpack.c.b16 %v833, %v827
        %v924 = vpack.c.b16 %v840, %v834
        %v925 = vpack.c.b16 %v841, %v835
        %v926 = vpack.c.b16 %v842, %v836
        %v927 = vpack.c.b16 %v843, %v837
        %v928 = vpack.c.b16 %v844, %v838
        %v929 = vpack.c.b16 %v845, %v839
        %v930 = vpack.c.b16 %v852, %v846
        %v931 = vpack.c.b16 %v853, %v847
        %v932 = vpack.c.b16 %v854, %v848
        %v933 = vpack.c.b16 %v855, %v849
        %v934 = vpack.c.b16 %v856, %v850
        %v935 = vpack.c.b16 %v857, %v851
        %v936 = vpack.c.b16 %v864, %v858
        %v937 = vpack.c.b16 %v865, %v859
        %v938 = vpack.c.b16 %v866, %v860
        %v939 = vpack.c.b16 %v867, %v861
        %v940 = vpack.c.b16 %v868, %v862
        %v941 = vpack.c.b16 %v869, %v863
        %v942 = vpack.c.b16 %v876, %v870
        %v943 = vpack.c.b16 %v877, %v871
        %v944 = vpack.c.b16 %v878, %v872
        %v945 = vpack.c.b16 %v879, %v873
        %v946 = vpack.c.b16 %v880, %v874
        %v947 = vpack.c.b16 %v881, %v875
        %v948 = vpack.c.b16 %v888, %v882
        %v949 = vpack.c.b16 %v889, %v883
        %v950 = vpack.c.b16 %v890, %v884
        %v951 = vpack.c.b16 %v891, %v885
        %v952 = vpack.c.b16 %v892, %v886
        %v953 = vpack.c.b16 %v893, %v887
        %v954 = vpack.c.b16 %v900, %v894
        %v955 = vpack.c.b16 %v901, %v895
        %v956 = vpack.c.b16 %v902, %v896
        %v957 = vpack.c.b16 %v903, %v897
        %v958 = vpack.c.b16 %v904, %v898
        %v959 = vpack.c.b16 %v905, %v899
        %v960 = vpack.c.b16 %v912, %v906
        %v961 = vpack.c.b16 %v913, %v907
        %v962 = vpack.c.b16 %v914, %v908
        %v963 = vpack.c.b16 %v915, %v909
        %v964 = vpack.c.b16 %v916, %v910
        %v965 = vpack.c.b16 %v917, %v911
        %1014 = vmatprep.subr.bf16.mxu0 %v961
        %1015 = vmatpush1.bf16.msra.mxu0 %v960
        %1016 = vmatprep.subr.bf16.mxu0 %v955
        %1017 = vmatpush1.bf16.msra.mxu0 %v954
        %1018 = vmatprep.subr.bf16.mxu0 %v949
        %1019 = vmatpush1.bf16.msra.mxu0 %v948
        %1020 = vmatprep.subr.bf16.mxu0 %v943
        %1021 = vmatpush1.bf16.msra.mxu0 %v942
        %1022 = vmatprep.subr.bf16.mxu0 %v937
        %1023 = vmatpush1.bf16.msra.mxu0 %v936
        %1024 = vmatprep.subr.bf16.mxu0 %v931
        %1025 = vmatpush1.bf16.msra.mxu0 %v930
        %1026 = vmatprep.subr.bf16.mxu0 %v925
        %1027 = vmatpush1.bf16.msra.mxu0 %v924
        %1028 = vmatprep.subr.bf16.mxu0 %v919
        %1029 = vmatpush1.bf16.msra.mxu0 %v918
        %1030 = vmatprep.subr.bf16.mxu0 0
        %1031 = vmatpush2.bf16.msra.mxu0 0
        %1032 = vmatprep.subr.bf16.mxu0 0
        %1033 = vmatpush2.bf16.msra.mxu0 0
        %1034 = vmatprep.subr.bf16.mxu0 0
        %1035 = vmatpush2.bf16.msra.mxu0 0
        %1036 = vmatprep.subr.bf16.mxu0 0
        %1037 = vmatpush2.bf16.msra.mxu0 0
        %1038 = vmatprep.subr.bf16.mxu0 0
        %1039 = vmatpush2.bf16.msra.mxu0 0
        %1040 = vmatprep.subr.bf16.mxu0 0
        %1041 = vmatpush2.bf16.msra.mxu0 0
        %1042 = vmatprep.subr.bf16.mxu0 0
        %1043 = vmatpush2.bf16.msra.mxu0 0
        %1044 = vmatprep.subr.bf16.mxu0 0
        %1045 = vmatpush2.bf16.msra.mxu0 0
        %1046 = vmatprep.mubr.bf16.mxu0 0
        %1047 = vmatmul.mubr.bf16.gmra.mxu0 %v692
        %v1048 = vpop.f32.mrf.mxu0
        %v1049 = vadd.f32 %v747, %v1048
        %v1050 = vpop.f32.mrf.mxu0
        %v1051 = vadd.f32 %v751, %v1050
        %v1052 = vpop.f32.mrf.mxu0
        %v1053 = vadd.f32 %v747, %v1052
        %v1054 = vpop.f32.mrf.mxu0
        %v1055 = vadd.f32 %v751, %v1054
        %1056 = vdwg.mxu0
        %1057 = vmatprep.subr.bf16.mxu0 %v963
        %1058 = vmatpush1.bf16.msra.mxu0 %v962
        %1059 = vmatprep.subr.bf16.mxu0 %v957
        %1060 = vmatpush1.bf16.msra.mxu0 %v956
        %1061 = vmatprep.subr.bf16.mxu0 %v951
        %1062 = vmatpush1.bf16.msra.mxu0 %v950
        %1063 = vmatprep.subr.bf16.mxu0 %v945
        %1064 = vmatpush1.bf16.msra.mxu0 %v944
        %1065 = vmatprep.subr.bf16.mxu0 %v939
        %1066 = vmatpush1.bf16.msra.mxu0 %v938
        %1067 = vmatprep.subr.bf16.mxu0 %v933
        %1068 = vmatpush1.bf16.msra.mxu0 %v932
        %1069 = vmatprep.subr.bf16.mxu0 %v927
        %1070 = vmatpush1.bf16.msra.mxu0 %v926
        %1071 = vmatprep.subr.bf16.mxu0 %v921
        %1072 = vmatpush1.bf16.msra.mxu0 %v920
        %1073 = vmatprep.subr.bf16.mxu0 0
        %1074 = vmatpush2.bf16.msra.mxu0 0
        %1075 = vmatprep.subr.bf16.mxu0 0
        %1076 = vmatpush2.bf16.msra.mxu0 0
        %1077 = vmatprep.subr.bf16.mxu0 0
        %1078 = vmatpush2.bf16.msra.mxu0 0
        %1079 = vmatprep.subr.bf16.mxu0 0
        %1080 = vmatpush2.bf16.msra.mxu0 0
        %1081 = vmatprep.subr.bf16.mxu0 0
        %1082 = vmatpush2.bf16.msra.mxu0 0
        %1083 = vmatprep.subr.bf16.mxu0 0
        %1084 = vmatpush2.bf16.msra.mxu0 0
        %1085 = vmatprep.subr.bf16.mxu0 0
        %1086 = vmatpush2.bf16.msra.mxu0 0
        %1087 = vmatprep.subr.bf16.mxu0 0
        %1088 = vmatpush2.bf16.msra.mxu0 0
        %1089 = vmatprep.mubr.bf16.mxu0 0
        %1090 = vmatmul.mubr.bf16.gmra.mxu0 %v692
        %v1091 = vpop.f32.mrf.mxu0
        %v1092 = vadd.f32 %v755, %v1091
        %v1093 = vpop.f32.mrf.mxu0
        %v1094 = vadd.f32 %v759, %v1093
        %v1095 = vpop.f32.mrf.mxu0
        %v1096 = vadd.f32 %v755, %v1095
        %v1097 = vpop.f32.mrf.mxu0
        %v1098 = vadd.f32 %v759, %v1097
        %1099 = vdwg.mxu0
        %1100 = vmatprep.subr.bf16.mxu0 %v965
        %1101 = vmatpush1.bf16.msra.mxu0 %v964
        %1102 = vmatprep.subr.bf16.mxu0 %v959
        %1103 = vmatpush1.bf16.msra.mxu0 %v958
        %1104 = vmatprep.subr.bf16.mxu0 %v953
        %1105 = vmatpush1.bf16.msra.mxu0 %v952
        %1106 = vmatprep.subr.bf16.mxu0 %v947
        %1107 = vmatpush1.bf16.msra.mxu0 %v946
        %1108 = vmatprep.subr.bf16.mxu0 %v941
        %1109 = vmatpush1.bf16.msra.mxu0 %v940
        %1110 = vmatprep.subr.bf16.mxu0 %v935
        %1111 = vmatpush1.bf16.msra.mxu0 %v934
        %1112 = vmatprep.subr.bf16.mxu0 %v929
        %1113 = vmatpush1.bf16.msra.mxu0 %v928
        %1114 = vmatprep.subr.bf16.mxu0 %v923
        %1115 = vmatpush1.bf16.msra.mxu0 %v922
        %1116 = vmatprep.subr.bf16.mxu0 0
        %1117 = vmatpush2.bf16.msra.mxu0 0
        %1118 = vmatprep.subr.bf16.mxu0 0
        %1119 = vmatpush2.bf16.msra.mxu0 0
        %1120 = vmatprep.subr.bf16.mxu0 0
        %1121 = vmatpush2.bf16.msra.mxu0 0
        %1122 = vmatprep.subr.bf16.mxu0 0
        %1123 = vmatpush2.bf16.msra.mxu0 0
        %1124 = vmatprep.subr.bf16.mxu0 0
        %1125 = vmatpush2.bf16.msra.mxu0 0
        %1126 = vmatprep.subr.bf16.mxu0 0
        %1127 = vmatpush2.bf16.msra.mxu0 0
        %1128 = vmatprep.subr.bf16.mxu0 0
        %1129 = vmatpush2.bf16.msra.mxu0 0
        %1130 = vmatprep.subr.bf16.mxu0 0
        %1131 = vmatpush2.bf16.msra.mxu0 0
        %1132 = vmatprep.mubr.bf16.mxu0 0
        %1133 = vmatmul.mubr.bf16.gmra.mxu0 %v692
        %v1134 = vpop.f32.mrf.mxu0
        %v1135 = vadd.f32 %v763, %v1134
        %v1136 = vpop.f32.mrf.mxu0
        %v1137 = vadd.f32 %v767, %v1136
        %v1138 = vpop.f32.mrf.mxu0
        %v1139 = vadd.f32 %v763, %v1138
        %v1140 = vpop.f32.mrf.mxu0
        %v1141 = vadd.f32 %v767, %v1140
        %1142 = vdwg.mxu0
        %v1143 = vpack.c.bf16 %v1053, %v1049
        %v1144 = vpack.c.bf16 %v1055, %v1051
        %v1145 = vpack.c.bf16 %v1096, %v1092
        %v1146 = vpack.c.bf16 %v1098, %v1094
        %v1147 = vpack.c.bf16 %v1139, %v1135
        %v1148 = vpack.c.bf16 %v1141, %v1137
        %1149 = vmatprep.subr.bf16.mxu0 0
        %1150 = vmatpush1.bf16.xpose.msra.mxu0 0
        %1151 = vmatprep.subr.bf16.mxu0 0
        %1152 = vmatpush1.bf16.xpose.msra.mxu0 0
        %1153 = vmatprep.subr.bf16.mxu0 0
        %1154 = vmatpush1.bf16.xpose.msra.mxu0 0
        %1155 = vmatprep.subr.bf16.mxu0 0
        %1156 = vmatpush1.bf16.xpose.msra.mxu0 0
        %1157 = vmatprep.subr.bf16.mxu0 0
        %1158 = vmatpush1.bf16.xpose.msra.mxu0 0
        %1159 = vmatprep.subr.bf16.mxu0 0
        %1160 = vmatpush1.bf16.xpose.msra.mxu0 0
        %1161 = vmatprep.subr.bf16.mxu0 0
        %1162 = vmatpush1.bf16.xpose.msra.mxu0 0
        %1163 = vmatprep.subr.bf16.mxu0 0
        %1164 = vmatpush1.bf16.xpose.msra.mxu0 %v1144
        %1165 = vmatprep.subr.bf16.mxu0 0
        %1166 = vmatpush2.bf16.xpose.msra.mxu0 0
        %1167 = vmatprep.subr.bf16.mxu0 0
        %1168 = vmatpush2.bf16.xpose.msra.mxu0 0
        %1169 = vmatprep.subr.bf16.mxu0 0
        %1170 = vmatpush2.bf16.xpose.msra.mxu0 0
        %1171 = vmatprep.subr.bf16.mxu0 0
        %1172 = vmatpush2.bf16.xpose.msra.mxu0 0
        %1173 = vmatprep.subr.bf16.mxu0 0
        %1174 = vmatpush2.bf16.xpose.msra.mxu0 0
        %1175 = vmatprep.subr.bf16.mxu0 0
        %1176 = vmatpush2.bf16.xpose.msra.mxu0 0
        %1177 = vmatprep.subr.bf16.mxu0 0
        %1178 = vmatpush2.bf16.xpose.msra.mxu0 0
        %1179 = vmatprep.subr.bf16.mxu0 0
        %1180 = vmatpush2.bf16.xpose.msra.mxu0 0
        %1181 = vmatprep.mubr.bf16.mxu0 0
        %1182 = vmatmul.mubr.bf16.gmra.mxu0 %v1143
        %v1183 = vpop.f32.mrf.mxu0
        %v1184 = vadd.f32 0.0, %v1183
        %v1185 = vpop.f32.mrf.mxu0
        %v1186 = vpop.f32.mrf.mxu0
        %v1187 = vadd.f32 0.0, %v1186
        %v1188 = vpop.f32.mrf.mxu0
        %1189 = vdwg.mxu0
        %v1190 = vmul.f32 %v1184, 0.125
        %v1191 = vmul.f32 %v1187, 0.125
        %v1193 = vlaneseq
        %v1194 = vshrl.u32 %v1193, 7
        %v1195 = vsub.s32 0, %v1194
        %v1196 = vrot.slane %v693, %v1195
        %v1198 = vadd.f32 %v1190, %v1196
        %v1199 = vadd.f32 %v1191, %v1196
        %vm1200 = vcmask 130048
        %v1201 = vsel %vm1200, %v1198, -inf
        %1202 = vmax.xlane.f32.xlu0 %v1201
        %v1203 = vpop.xlane.xlu0 %1202
        %v1204 = vsel %vm1200, %v1199, -inf
        %1205 = vmax.xlane.f32.xlu0 %v1204
        %v1206 = vpop.xlane.xlu0 %1205
        %v1207 = vsub.f32 %v1198, %v1203
        %v1208 = vsub.f32 %v1199, %v1206
        %v1209 = vmul.f32 %v1207, 1.442695
        %v1210 = vpow.pop %v1209
        %v1211 = vmul.f32 %v1208, 1.442695
        %v1212 = vpow.pop %v1211
        %v1213 = vsel %vm1200, %v1210, 0.0
        %1214 = vadd.xlane.f32.xlu0 %v1213
        %v1215 = vpop.xlane.xlu0 %1214
        %v1216 = vsel %vm1200, %v1212, 0.0
        %1217 = vadd.xlane.f32.xlu0 %v1216
        %v1218 = vpop.xlane.xlu0 %1217
        %v1219 = vrcp.pop %v1215
        %v1220 = vrcp.pop %v1218
        %v1221 = vmul.f32 %v1210, %v1219
        %v1222 = vmul.f32 %v1212, %v1220
        %v1223 = vpack.c.bf16 %v1222, %v1221
        %v1225 = vsel %vm1200, %v1223, 0
        %1227 = vmatprep.subr.bf16.mxu0 0
        %1228 = vmatpush1.bf16.msra.mxu0 0
        %1229 = vmatprep.subr.bf16.mxu0 0
        %1230 = vmatpush1.bf16.msra.mxu0 0
        %1231 = vmatprep.subr.bf16.mxu0 0
        %1232 = vmatpush1.bf16.msra.mxu0 0
        %1233 = vmatprep.subr.bf16.mxu0 0
        %1234 = vmatpush1.bf16.msra.mxu0 0
        %1235 = vmatprep.subr.bf16.mxu0 0
        %1236 = vmatpush1.bf16.msra.mxu0 0
        %1237 = vmatprep.subr.bf16.mxu0 0
        %1238 = vmatpush1.bf16.msra.mxu0 0
        %1239 = vmatprep.subr.bf16.mxu0 0
        %1240 = vmatpush1.bf16.msra.mxu0 0
        %1241 = vmatprep.subr.bf16.mxu0 0
        %1242 = vmatpush1.bf16.msra.mxu0 %v1145
        %1243 = vmatprep.subr.bf16.mxu0 0
        %1244 = vmatpush2.bf16.msra.mxu0 0
        %1245 = vmatprep.subr.bf16.mxu0 0
        %1246 = vmatpush2.bf16.msra.mxu0 0
        %1247 = vmatprep.subr.bf16.mxu0 0
        %1248 = vmatpush2.bf16.msra.mxu0 0
        %1249 = vmatprep.subr.bf16.mxu0 0
        %1250 = vmatpush2.bf16.msra.mxu0 0
        %1251 = vmatprep.subr.bf16.mxu0 0
        %1252 = vmatpush2.bf16.msra.mxu0 0
        %1253 = vmatprep.subr.bf16.mxu0 0
        %1254 = vmatpush2.bf16.msra.mxu0 0
        %1255 = vmatprep.subr.bf16.mxu0 0
        %1256 = vmatpush2.bf16.msra.mxu0 0
        %1257 = vmatprep.subr.bf16.mxu0 0
        %1258 = vmatpush2.bf16.msra.mxu0 0
        %1259 = vmatprep.mubr.bf16.mxu0 0
        %1260 = vmatmul.mubr.bf16.gmra.mxu0 %v1225
        %v1261 = vpop.f32.mrf.mxu0
        %v1262 = vadd.f32 0.0, %v1261
        %v1263 = vpop.f32.mrf.mxu0
        %v1264 = vpop.f32.mrf.mxu0
        %v1265 = vadd.f32 0.0, %v1264
        %v1266 = vpop.f32.mrf.mxu0
        %1267 = vdwg.mxu0
        %v1268 = vpack.c.bf16 %v1265, %v1262
        %1269 = vmatprep.subr.bf16.mxu0 0
        %1270 = vmatpush1.bf16.xpose.msra.mxu0 0
        %1271 = vmatprep.subr.bf16.mxu0 0
        %1272 = vmatpush1.bf16.xpose.msra.mxu0 0
        %1273 = vmatprep.subr.bf16.mxu0 0
        %1274 = vmatpush1.bf16.xpose.msra.mxu0 0
        %1275 = vmatprep.subr.bf16.mxu0 0
        %1276 = vmatpush1.bf16.xpose.msra.mxu0 0
        %1277 = vmatprep.subr.bf16.mxu0 0
        %1278 = vmatpush1.bf16.xpose.msra.mxu0 0
        %1279 = vmatprep.subr.bf16.mxu0 0
        %1280 = vmatpush1.bf16.xpose.msra.mxu0 0
        %1281 = vmatprep.subr.bf16.mxu0 0
        %1282 = vmatpush1.bf16.xpose.msra.mxu0 0
        %1283 = vmatprep.subr.bf16.mxu0 0
        %1284 = vmatpush1.bf16.xpose.msra.mxu0 %v1147
        %1285 = vmatprep.subr.bf16.mxu0 0
        %1286 = vmatpush2.bf16.xpose.msra.mxu0 0
        %1287 = vmatprep.subr.bf16.mxu0 0
        %1288 = vmatpush2.bf16.xpose.msra.mxu0 0
        %1289 = vmatprep.subr.bf16.mxu0 0
        %1290 = vmatpush2.bf16.xpose.msra.mxu0 0
        %1291 = vmatprep.subr.bf16.mxu0 0
        %1292 = vmatpush2.bf16.xpose.msra.mxu0 0
        %1293 = vmatprep.subr.bf16.mxu0 0
        %1294 = vmatpush2.bf16.xpose.msra.mxu0 0
        %1295 = vmatprep.subr.bf16.mxu0 0
        %1296 = vmatpush2.bf16.xpose.msra.mxu0 0
        %1297 = vmatprep.subr.bf16.mxu0 0
        %1298 = vmatpush2.bf16.xpose.msra.mxu0 0
        %1299 = vmatprep.subr.bf16.mxu0 0
        %1300 = vmatpush2.bf16.xpose.msra.mxu0 0
        %1301 = vmatprep.mubr.bf16.mxu0 0
        %1302 = vmatmul.mubr.bf16.gmra.mxu0 %v1146
        %v1303 = vpop.f32.mrf.mxu0
        %v1304 = vadd.f32 0.0, %v1303
        %v1305 = vpop.f32.mrf.mxu0
        %v1306 = vpop.f32.mrf.mxu0
        %v1307 = vadd.f32 0.0, %v1306
        %v1308 = vpop.f32.mrf.mxu0
        %1309 = vdwg.mxu0
        %v1310 = vmul.f32 %v1304, 0.125
        %v1311 = vmul.f32 %v1307, 0.125
        %v1312 = vadd.f32 %v1310, %v1196
        %v1313 = vadd.f32 %v1311, %v1196
        %v1314 = vsel %vm1200, %v1312, -inf
        %1315 = vmax.xlane.f32.xlu0 %v1314
        %v1316 = vpop.xlane.xlu0 %1315
        %v1317 = vsel %vm1200, %v1313, -inf
        %1318 = vmax.xlane.f32.xlu0 %v1317
        %v1319 = vpop.xlane.xlu0 %1318
        %v1320 = vsub.f32 %v1312, %v1316
        %v1321 = vsub.f32 %v1313, %v1319
        %v1322 = vmul.f32 %v1320, 1.442695
        %v1323 = vpow.pop %v1322
        %v1324 = vmul.f32 %v1321, 1.442695
        %v1325 = vpow.pop %v1324
        %v1326 = vsel %vm1200, %v1323, 0.0
        %1327 = vadd.xlane.f32.xlu0 %v1326
        %v1328 = vpop.xlane.xlu0 %1327
        %v1329 = vsel %vm1200, %v1325, 0.0
        %1330 = vadd.xlane.f32.xlu0 %v1329
        %v1331 = vpop.xlane.xlu0 %1330
        %v1332 = vrcp.pop %v1328
        %v1333 = vrcp.pop %v1331
        %v1334 = vmul.f32 %v1323, %v1332
        %v1335 = vmul.f32 %v1325, %v1333
        %v1336 = vpack.c.bf16 %v1335, %v1334
        %v1338 = vsel %vm1200, %v1336, 0
        %1340 = vmatprep.subr.bf16.mxu0 0
        %1341 = vmatpush1.bf16.msra.mxu0 0
        %1342 = vmatprep.subr.bf16.mxu0 0
        %1343 = vmatpush1.bf16.msra.mxu0 0
        %1344 = vmatprep.subr.bf16.mxu0 0
        %1345 = vmatpush1.bf16.msra.mxu0 0
        %1346 = vmatprep.subr.bf16.mxu0 0
        %1347 = vmatpush1.bf16.msra.mxu0 0
        %1348 = vmatprep.subr.bf16.mxu0 0
        %1349 = vmatpush1.bf16.msra.mxu0 0
        %1350 = vmatprep.subr.bf16.mxu0 0
        %1351 = vmatpush1.bf16.msra.mxu0 0
        %1352 = vmatprep.subr.bf16.mxu0 0
        %1353 = vmatpush1.bf16.msra.mxu0 0
        %1354 = vmatprep.subr.bf16.mxu0 0
        %1355 = vmatpush1.bf16.msra.mxu0 %v1148
        %1356 = vmatprep.subr.bf16.mxu0 0
        %1357 = vmatpush2.bf16.msra.mxu0 0
        %1358 = vmatprep.subr.bf16.mxu0 0
        %1359 = vmatpush2.bf16.msra.mxu0 0
        %1360 = vmatprep.subr.bf16.mxu0 0
        %1361 = vmatpush2.bf16.msra.mxu0 0
        %1362 = vmatprep.subr.bf16.mxu0 0
        %1363 = vmatpush2.bf16.msra.mxu0 0
        %1364 = vmatprep.subr.bf16.mxu0 0
        %1365 = vmatpush2.bf16.msra.mxu0 0
        %1366 = vmatprep.subr.bf16.mxu0 0
        %1367 = vmatpush2.bf16.msra.mxu0 0
        %1368 = vmatprep.subr.bf16.mxu0 0
        %1369 = vmatpush2.bf16.msra.mxu0 0
        %1370 = vmatprep.subr.bf16.mxu0 0
        %1371 = vmatpush2.bf16.msra.mxu0 0
        %1372 = vmatprep.mubr.bf16.mxu0 0
        %1373 = vmatmul.mubr.bf16.gmra.mxu0 %v1338
        %v1374 = vpop.f32.mrf.mxu0
        %v1375 = vadd.f32 0.0, %v1374
        %v1376 = vpop.f32.mrf.mxu0
        %v1377 = vpop.f32.mrf.mxu0
        %v1378 = vadd.f32 0.0, %v1377
        %v1379 = vpop.f32.mrf.mxu0
        %1380 = vdwg.mxu0
        %v1381 = vpack.c.bf16 %v1378, %v1375
        %v1382 = vld [vmem:[#allocation10] sm:$0xf]
        %v1383 = vld [vmem:[#allocation10 + $0x4] sm:$0xf]
        %v1384 = vld [vmem:[#allocation10 + $0x8] sm:$0xf]
        %v1385 = vld [vmem:[#allocation10 + $0xc] sm:$0xf]
        %v1386 = vld [vmem:[#allocation10 + $0x10] sm:$0xf]
        %v1387 = vld [vmem:[#allocation10 + $0x14] sm:$0xf]
        %v1388 = vld [vmem:[#allocation10 + $0x18] sm:$0xf]
        %v1389 = vld [vmem:[#allocation10 + $0x1c] sm:$0xf]
        %v1390 = vld [vmem:[#allocation10 + $0x20] sm:$0xf]
        %v1391 = vld [vmem:[#allocation10 + $0x24] sm:$0xf]
        %v1392 = vld [vmem:[#allocation10 + $0x28] sm:$0xf]
        %v1393 = vld [vmem:[#allocation10 + $0x2c] sm:$0xf]
        %v1394 = vld [vmem:[#allocation10 + $0x30] sm:$0xf]
        %v1395 = vld [vmem:[#allocation10 + $0x34] sm:$0xf]
        %v1396 = vld [vmem:[#allocation10 + $0x38] sm:$0xf]
        %v1397 = vld [vmem:[#allocation10 + $0x3c] sm:$0xf]
        %v1398 = vld [vmem:[#allocation10 + $0x40] sm:$0xf]
        %v1399 = vld [vmem:[#allocation10 + $0x44] sm:$0xf]
        %v1400 = vld [vmem:[#allocation10 + $0x48] sm:$0xf]
        %v1401 = vld [vmem:[#allocation10 + $0x4c] sm:$0xf]
        %v1402 = vld [vmem:[#allocation10 + $0x50] sm:$0xf]
        %v1403 = vld [vmem:[#allocation10 + $0x54] sm:$0xf]
        %v1404 = vld [vmem:[#allocation10 + $0x58] sm:$0xf]
        %v1405 = vld [vmem:[#allocation10 + $0x5c] sm:$0xf]
        %v1406 = vld [vmem:[#allocation10 + $0x60] sm:$0xf]
        %v1407 = vld [vmem:[#allocation10 + $0x64] sm:$0xf]
        %v1408 = vld [vmem:[#allocation10 + $0x68] sm:$0xf]
        %v1409 = vld [vmem:[#allocation10 + $0x6c] sm:$0xf]
        %v1410 = vld [vmem:[#allocation10 + $0x70] sm:$0xf]
        %v1411 = vld [vmem:[#allocation10 + $0x74] sm:$0xf]
        %v1412 = vld [vmem:[#allocation10 + $0x78] sm:$0xf]
        %v1413 = vld [vmem:[#allocation10 + $0x7c] sm:$0xf]
        %v1414 = vld [vmem:[%s7] sm:$0x1]
        %v1416 = vlaneseq
        %v1417 = vshrl.u32 %v1416, 7
        %v1418 = vsub.s32 0, %v1417
        %v1419 = vrot.slane %v1414, %v1418
        %v1453 = vunpack.c.l.b16 %v1382
        %v1454 = vunpack.c.l.b16 %v1383
        %v1455 = vunpack.c.l.b16 %v1384
        %v1456 = vunpack.c.l.b16 %v1385
        %v1457 = vunpack.c.l.b16 %v1386
        %v1458 = vunpack.c.l.b16 %v1387
        %v1459 = vunpack.c.l.b16 %v1388
        %v1460 = vunpack.c.l.b16 %v1389
        %v1461 = vunpack.c.l.b16 %v1390
        %v1462 = vunpack.c.l.b16 %v1391
        %v1463 = vunpack.c.l.b16 %v1392
        %v1464 = vunpack.c.l.b16 %v1393
        %v1465 = vunpack.c.l.b16 %v1394
        %v1466 = vunpack.c.l.b16 %v1395
        %v1467 = vunpack.c.l.b16 %v1396
        %v1468 = vunpack.c.l.b16 %v1397
        %v1469 = vunpack.c.l.b16 %v1398
        %v1470 = vunpack.c.l.b16 %v1399
        %v1471 = vunpack.c.l.b16 %v1400
        %v1472 = vunpack.c.l.b16 %v1401
        %v1473 = vunpack.c.l.b16 %v1402
        %v1474 = vunpack.c.l.b16 %v1403
        %v1475 = vunpack.c.l.b16 %v1404
        %v1476 = vunpack.c.l.b16 %v1405
        %v1477 = vunpack.c.l.b16 %v1406
        %v1478 = vunpack.c.l.b16 %v1407
        %v1479 = vunpack.c.l.b16 %v1408
        %v1480 = vunpack.c.l.b16 %v1409
        %v1481 = vunpack.c.l.b16 %v1410
        %v1482 = vunpack.c.l.b16 %v1411
        %v1483 = vunpack.c.l.b16 %v1412
        %v1484 = vunpack.c.l.b16 %v1413
        %v1485 = vpack.c.b16 %v1454, %v1453
        %v1486 = vpack.c.b16 %v1456, %v1455
        %v1487 = vpack.c.b16 %v1458, %v1457
        %v1488 = vpack.c.b16 %v1460, %v1459
        %v1489 = vpack.c.b16 %v1462, %v1461
        %v1490 = vpack.c.b16 %v1464, %v1463
        %v1491 = vpack.c.b16 %v1466, %v1465
        %v1492 = vpack.c.b16 %v1468, %v1467
        %v1493 = vpack.c.b16 %v1470, %v1469
        %v1494 = vpack.c.b16 %v1472, %v1471
        %v1495 = vpack.c.b16 %v1474, %v1473
        %v1496 = vpack.c.b16 %v1476, %v1475
        %v1497 = vpack.c.b16 %v1478, %v1477
        %v1498 = vpack.c.b16 %v1480, %v1479
        %v1499 = vpack.c.b16 %v1482, %v1481
        %v1500 = vpack.c.b16 %v1484, %v1483
        %1517 = vmatprep.subr.bf16.mxu0 0
        %1518 = vmatpush1.bf16.msra.mxu0 %v1492
        %1519 = vmatprep.subr.bf16.mxu0 0
        %1520 = vmatpush1.bf16.msra.mxu0 %v1491
        %1521 = vmatprep.subr.bf16.mxu0 0
        %1522 = vmatpush1.bf16.msra.mxu0 %v1490
        %1523 = vmatprep.subr.bf16.mxu0 0
        %1524 = vmatpush1.bf16.msra.mxu0 %v1489
        %1525 = vmatprep.subr.bf16.mxu0 0
        %1526 = vmatpush1.bf16.msra.mxu0 %v1488
        %1527 = vmatprep.subr.bf16.mxu0 0
        %1528 = vmatpush1.bf16.msra.mxu0 %v1487
        %1529 = vmatprep.subr.bf16.mxu0 0
        %1530 = vmatpush1.bf16.msra.mxu0 %v1486
        %1531 = vmatprep.subr.bf16.mxu0 0
        %1532 = vmatpush1.bf16.msra.mxu0 %v1485
        %1533 = vmatprep.subr.bf16.mxu0 0
        %1534 = vmatpush2.bf16.msra.mxu0 %v1500
        %1535 = vmatprep.subr.bf16.mxu0 0
        %1536 = vmatpush2.bf16.msra.mxu0 %v1499
        %1537 = vmatprep.subr.bf16.mxu0 0
        %1538 = vmatpush2.bf16.msra.mxu0 %v1498
        %1539 = vmatprep.subr.bf16.mxu0 0
        %1540 = vmatpush2.bf16.msra.mxu0 %v1497
        %1541 = vmatprep.subr.bf16.mxu0 0
        %1542 = vmatpush2.bf16.msra.mxu0 %v1496
        %1543 = vmatprep.subr.bf16.mxu0 0
        %1544 = vmatpush2.bf16.msra.mxu0 %v1495
        %1545 = vmatprep.subr.bf16.mxu0 0
        %1546 = vmatpush2.bf16.msra.mxu0 %v1494
        %1547 = vmatprep.subr.bf16.mxu0 0
        %1548 = vmatpush2.bf16.msra.mxu0 %v1493
        %1549 = vmatprep.mubr.bf16.mxu0 %v1381
        %1550 = vmatmul.mubr.bf16.gmra.mxu0 %v1268
        %v1551 = vpop.f32.mrf.mxu0
        %v1552 = vadd.f32 %v1419, %v1551
        %v1553 = vpop.f32.mrf.mxu0
        %v1554 = vpop.f32.mrf.mxu0
        %v1555 = vadd.f32 %v1419, %v1554
        %v1556 = vpop.f32.mrf.mxu0
        %1557 = vdwg.mxu0
        %v1558 = vadd.f32 %v1552, %v690
        %v1559 = vadd.f32 %v1555, %v691
        %v1560 = vld [vmem:[%s8] sm:$0x1]
        %v1561 = vld [vmem:[%s9] sm:$0x1]
        %1562 = vadd.xlane.f32.xlu0 %v1558
        %v1563 = vpop.xlane.xlu0 %1562
        %1564 = vadd.xlane.f32.xlu0 %v1559
        %v1565 = vpop.xlane.xlu0 %1564
        %v1566 = vmul.f32 %v1563, %v657
        %v1567 = vmul.f32 %v1565, %v657
        %v1568 = vsub.f32 %v1558, %v1566
        %v1569 = vsub.f32 %v1559, %v1567
        %v1570 = vmul.f32 %v1568, %v1568
        %v1571 = vmul.f32 %v1569, %v1569
        %1572 = vadd.xlane.f32.xlu0 %v1570
        %v1573 = vpop.xlane.xlu0 %1572
        %1574 = vadd.xlane.f32.xlu0 %v1571
        %v1575 = vpop.xlane.xlu0 %1574
        %v1576 = vmul.f32 %v1573, %v657
        %v1577 = vmul.f32 %v1575, %v657
        %v1578 = vadd.f32 %v1576, 1e-12
        %v1579 = vadd.f32 %v1577, 1e-12
        %v1580 = vrsqrt.pop %v1578
        %v1581 = vrsqrt.pop %v1579
        %v1582 = vmul.f32 %v1568, %v1580
        %v1583 = vmul.f32 %v1569, %v1581
        %v1585 = vlaneseq
        %v1586 = vshrl.u32 %v1585, 7
        %v1587 = vsub.s32 0, %v1586
        %v1588 = vrot.slane %v1560, %v1587
        %v1590 = vmul.f32 %v1582, %v1588
        %v1591 = vmul.f32 %v1583, %v1588
        %v1593 = vlaneseq
        %v1594 = vshrl.u32 %v1593, 7
        %v1595 = vsub.s32 0, %v1594
        %v1596 = vrot.slane %v1561, %v1595
        %v1598 = vadd.f32 %v1590, %v1596
        %v1599 = vadd.f32 %v1591, %v1596
        %v1600 = vpack.c.bf16 %v1599, %v1598
        %v1601 = vld [vmem:[#allocation11] sm:$0xff]
        %v1602 = vld [vmem:[#allocation11 + $0x8] sm:$0xff]
        %v1603 = vld [vmem:[#allocation11 + $0x10] sm:$0xff]
        %v1604 = vld [vmem:[#allocation11 + $0x18] sm:$0xff]
        %v1605 = vld [vmem:[#allocation11 + $0x20] sm:$0xff]
        %v1606 = vld [vmem:[#allocation11 + $0x28] sm:$0xff]
        %v1607 = vld [vmem:[#allocation11 + $0x30] sm:$0xff]
        %v1608 = vld [vmem:[#allocation11 + $0x38] sm:$0xff]
        %v1609 = vld [vmem:[#allocation11 + $0x40] sm:$0xff]
        %v1610 = vld [vmem:[#allocation11 + $0x48] sm:$0xff]
        %v1611 = vld [vmem:[#allocation11 + $0x50] sm:$0xff]
        %v1612 = vld [vmem:[#allocation11 + $0x58] sm:$0xff]
        %v1613 = vld [vmem:[#allocation11 + $0x60] sm:$0xff]
        %v1614 = vld [vmem:[#allocation11 + $0x68] sm:$0xff]
        %v1615 = vld [vmem:[#allocation11 + $0x70] sm:$0xff]
        %v1616 = vld [vmem:[#allocation11 + $0x78] sm:$0xff]
        %v1617 = vld [vmem:[%s11] sm:$0x3]
        %v1619 = vlaneseq
        %v1620 = vshrl.u32 %v1619, 7
        %v1621 = vsub.s32 0, %v1620
        %v1622 = vrot.slane %v1617, %v1621
        %v1623 = vlaneseq
        %v1624 = vshrl.u32 %v1623, 7
        %v1625 = vsub.s32 1, %v1624
        %v1626 = vrot.slane %v1617, %v1625
        %v1645 = vunpack.c.l.b16 %v1601
        %v1646 = vunpack.c.h.b16 %v1601
        %v1647 = vunpack.c.l.b16 %v1602
        %v1648 = vunpack.c.h.b16 %v1602
        %v1649 = vunpack.c.l.b16 %v1603
        %v1650 = vunpack.c.h.b16 %v1603
        %v1651 = vunpack.c.l.b16 %v1604
        %v1652 = vunpack.c.h.b16 %v1604
        %v1653 = vunpack.c.l.b16 %v1605
        %v1654 = vunpack.c.h.b16 %v1605
        %v1655 = vunpack.c.l.b16 %v1606
        %v1656 = vunpack.c.h.b16 %v1606
        %v1657 = vunpack.c.l.b16 %v1607
        %v1658 = vunpack.c.h.b16 %v1607
        %v1659 = vunpack.c.l.b16 %v1608
        %v1660 = vunpack.c.h.b16 %v1608
        %v1661 = vunpack.c.l.b16 %v1609
        %v1662 = vunpack.c.h.b16 %v1609
        %v1663 = vunpack.c.l.b16 %v1610
        %v1664 = vunpack.c.h.b16 %v1610
        %v1665 = vunpack.c.l.b16 %v1611
        %v1666 = vunpack.c.h.b16 %v1611
        %v1667 = vunpack.c.l.b16 %v1612
        %v1668 = vunpack.c.h.b16 %v1612
        %v1669 = vunpack.c.l.b16 %v1613
        %v1670 = vunpack.c.h.b16 %v1613
        %v1671 = vunpack.c.l.b16 %v1614
        %v1672 = vunpack.c.h.b16 %v1614
        %v1673 = vunpack.c.l.b16 %v1615
        %v1674 = vunpack.c.h.b16 %v1615
        %v1675 = vunpack.c.l.b16 %v1616
        %v1676 = vunpack.c.h.b16 %v1616
        %v1677 = vpack.c.b16 %v1647, %v1645
        %v1678 = vpack.c.b16 %v1648, %v1646
        %v1679 = vpack.c.b16 %v1651, %v1649
        %v1680 = vpack.c.b16 %v1652, %v1650
        %v1681 = vpack.c.b16 %v1655, %v1653
        %v1682 = vpack.c.b16 %v1656, %v1654
        %v1683 = vpack.c.b16 %v1659, %v1657
        %v1684 = vpack.c.b16 %v1660, %v1658
        %v1685 = vpack.c.b16 %v1663, %v1661
        %v1686 = vpack.c.b16 %v1664, %v1662
        %v1687 = vpack.c.b16 %v1667, %v1665
        %v1688 = vpack.c.b16 %v1668, %v1666
        %v1689 = vpack.c.b16 %v1671, %v1669
        %v1690 = vpack.c.b16 %v1672, %v1670
        %v1691 = vpack.c.b16 %v1675, %v1673
        %v1692 = vpack.c.b16 %v1676, %v1674
        %1709 = vmatprep.subr.bf16.mxu0 %v1692
        %1710 = vmatpush1.bf16.msra.mxu0 %v1691
        %1711 = vmatprep.subr.bf16.mxu0 %v1690
        %1712 = vmatpush1.bf16.msra.mxu0 %v1689
        %1713 = vmatprep.subr.bf16.mxu0 %v1688
        %1714 = vmatpush1.bf16.msra.mxu0 %v1687
        %1715 = vmatprep.subr.bf16.mxu0 %v1686
        %1716 = vmatpush1.bf16.msra.mxu0 %v1685
        %1717 = vmatprep.subr.bf16.mxu0 %v1684
        %1718 = vmatpush1.bf16.msra.mxu0 %v1683
        %1719 = vmatprep.subr.bf16.mxu0 %v1682
        %1720 = vmatpush1.bf16.msra.mxu0 %v1681
        %1721 = vmatprep.subr.bf16.mxu0 %v1680
        %1722 = vmatpush1.bf16.msra.mxu0 %v1679
        %1723 = vmatprep.subr.bf16.mxu0 %v1678
        %1724 = vmatpush1.bf16.msra.mxu0 %v1677
        %1725 = vmatprep.subr.bf16.mxu0 0
        %1726 = vmatpush2.bf16.msra.mxu0 0
        %1727 = vmatprep.subr.bf16.mxu0 0
        %1728 = vmatpush2.bf16.msra.mxu0 0
        %1729 = vmatprep.subr.bf16.mxu0 0
        %1730 = vmatpush2.bf16.msra.mxu0 0
        %1731 = vmatprep.subr.bf16.mxu0 0
        %1732 = vmatpush2.bf16.msra.mxu0 0
        %1733 = vmatprep.subr.bf16.mxu0 0
        %1734 = vmatpush2.bf16.msra.mxu0 0
        %1735 = vmatprep.subr.bf16.mxu0 0
        %1736 = vmatpush2.bf16.msra.mxu0 0
        %1737 = vmatprep.subr.bf16.mxu0 0
        %1738 = vmatpush2.bf16.msra.mxu0 0
        %1739 = vmatprep.subr.bf16.mxu0 0
        %1740 = vmatpush2.bf16.msra.mxu0 0
        %1741 = vmatprep.mubr.bf16.mxu0 0
        %1742 = vmatmul.mubr.bf16.gmra.mxu0 %v1600
        %v1743 = vpop.f32.mrf.mxu0
        %v1744 = vadd.f32 %v1622, %v1743
        %v1745 = vpop.f32.mrf.mxu0
        %v1746 = vadd.f32 %v1626, %v1745
        %v1747 = vpop.f32.mrf.mxu0
        %v1748 = vadd.f32 %v1622, %v1747
        %v1749 = vpop.f32.mrf.mxu0
        %v1750 = vadd.f32 %v1626, %v1749
        %1751 = vdwg.mxu0
        %v1752 = vmul.f32 %v1744, 0.5
        %v1753 = vmul.f32 %v1746, 0.5
        %v1754 = vmul.f32 %v1748, 0.5
        %v1755 = vmul.f32 %v1750, 0.5
        %v1756 = vmul.f32 %v1744, 0.044715
        %v1757 = vmul.f32 %v1746, 0.044715
        %v1758 = vmul.f32 %v1748, 0.044715
        %v1759 = vmul.f32 %v1750, 0.044715
        %v1760 = vmul.f32 %v1756, %v1744
        %v1761 = vmul.f32 %v1757, %v1746
        %v1762 = vmul.f32 %v1758, %v1748
        %v1763 = vmul.f32 %v1759, %v1750
        %v1764 = vmul.f32 %v1760, %v1744
        %v1765 = vmul.f32 %v1761, %v1746
        %v1766 = vmul.f32 %v1762, %v1748
        %v1767 = vmul.f32 %v1763, %v1750
        %v1768 = vadd.f32 %v1744, %v1764
        %v1769 = vadd.f32 %v1746, %v1765
        %v1770 = vadd.f32 %v1748, %v1766
        %v1771 = vadd.f32 %v1750, %v1767
        %v1772 = vmul.f32 %v1768, 0.7978846
        %v1773 = vmul.f32 %v1769, 0.7978846
        %v1774 = vmul.f32 %v1770, 0.7978846
        %v1775 = vmul.f32 %v1771, 0.7978846
        %v1776 = vtanh.pop %v1772
        %v1777 = vtanh.pop %v1773
        %v1778 = vtanh.pop %v1774
        %v1779 = vtanh.pop %v1775
        %v1780 = vadd.f32 %v1776, 1.0
        %v1781 = vadd.f32 %v1777, 1.0
        %v1782 = vadd.f32 %v1778, 1.0
        %v1783 = vadd.f32 %v1779, 1.0
        %v1784 = vmul.f32 %v1752, %v1780
        %v1785 = vmul.f32 %v1753, %v1781
        %v1786 = vmul.f32 %v1754, %v1782
        %v1787 = vmul.f32 %v1755, %v1783
        %v1788 = vpack.c.bf16 %v1786, %v1784
        %v1789 = vpack.c.bf16 %v1787, %v1785
        %v1790 = vld [vmem:[#allocation13] sm:$0xf]
        %v1791 = vld [vmem:[#allocation13 + $0x4] sm:$0xf]
        %v1792 = vld [vmem:[#allocation13 + $0x8] sm:$0xf]
        %v1793 = vld [vmem:[#allocation13 + $0xc] sm:$0xf]
        %v1794 = vld [vmem:[#allocation13 + $0x10] sm:$0xf]
        %v1795 = vld [vmem:[#allocation13 + $0x14] sm:$0xf]
        %v1796 = vld [vmem:[#allocation13 + $0x18] sm:$0xf]
        %v1797 = vld [vmem:[#allocation13 + $0x1c] sm:$0xf]
        %v1798 = vld [vmem:[#allocation13 + $0x20] sm:$0xf]
        %v1799 = vld [vmem:[#allocation13 + $0x24] sm:$0xf]
        %v1800 = vld [vmem:[#allocation13 + $0x28] sm:$0xf]
        %v1801 = vld [vmem:[#allocation13 + $0x2c] sm:$0xf]
        %v1802 = vld [vmem:[#allocation13 + $0x30] sm:$0xf]
        %v1803 = vld [vmem:[#allocation13 + $0x34] sm:$0xf]
        %v1804 = vld [vmem:[#allocation13 + $0x38] sm:$0xf]
        %v1805 = vld [vmem:[#allocation13 + $0x3c] sm:$0xf]
        %v1806 = vld [vmem:[#allocation13 + $0x40] sm:$0xf]
        %v1807 = vld [vmem:[#allocation13 + $0x44] sm:$0xf]
        %v1808 = vld [vmem:[#allocation13 + $0x48] sm:$0xf]
        %v1809 = vld [vmem:[#allocation13 + $0x4c] sm:$0xf]
        %v1810 = vld [vmem:[#allocation13 + $0x50] sm:$0xf]
        %v1811 = vld [vmem:[#allocation13 + $0x54] sm:$0xf]
        %v1812 = vld [vmem:[#allocation13 + $0x58] sm:$0xf]
        %v1813 = vld [vmem:[#allocation13 + $0x5c] sm:$0xf]
        %v1814 = vld [vmem:[#allocation13 + $0x60] sm:$0xf]
        %v1815 = vld [vmem:[#allocation13 + $0x64] sm:$0xf]
        %v1816 = vld [vmem:[#allocation13 + $0x68] sm:$0xf]
        %v1817 = vld [vmem:[#allocation13 + $0x6c] sm:$0xf]
        %v1818 = vld [vmem:[#allocation13 + $0x70] sm:$0xf]
        %v1819 = vld [vmem:[#allocation13 + $0x74] sm:$0xf]
        %v1820 = vld [vmem:[#allocation13 + $0x78] sm:$0xf]
        %v1821 = vld [vmem:[#allocation13 + $0x7c] sm:$0xf]
        %v1822 = vld [vmem:[%s13] sm:$0x1]
        %v1824 = vlaneseq
        %v1825 = vshrl.u32 %v1824, 7
        %v1826 = vsub.s32 0, %v1825
        %v1827 = vrot.slane %v1822, %v1826
        %v1861 = vunpack.c.l.b16 %v1790
        %v1862 = vunpack.c.l.b16 %v1791
        %v1863 = vunpack.c.l.b16 %v1792
        %v1864 = vunpack.c.l.b16 %v1793
        %v1865 = vunpack.c.l.b16 %v1794
        %v1866 = vunpack.c.l.b16 %v1795
        %v1867 = vunpack.c.l.b16 %v1796
        %v1868 = vunpack.c.l.b16 %v1797
        %v1869 = vunpack.c.l.b16 %v1798
        %v1870 = vunpack.c.l.b16 %v1799
        %v1871 = vunpack.c.l.b16 %v1800
        %v1872 = vunpack.c.l.b16 %v1801
        %v1873 = vunpack.c.l.b16 %v1802
        %v1874 = vunpack.c.l.b16 %v1803
        %v1875 = vunpack.c.l.b16 %v1804
        %v1876 = vunpack.c.l.b16 %v1805
        %v1877 = vunpack.c.l.b16 %v1806
        %v1878 = vunpack.c.l.b16 %v1807
        %v1879 = vunpack.c.l.b16 %v1808
        %v1880 = vunpack.c.l.b16 %v1809
        %v1881 = vunpack.c.l.b16 %v1810
        %v1882 = vunpack.c.l.b16 %v1811
        %v1883 = vunpack.c.l.b16 %v1812
        %v1884 = vunpack.c.l.b16 %v1813
        %v1885 = vunpack.c.l.b16 %v1814
        %v1886 = vunpack.c.l.b16 %v1815
        %v1887 = vunpack.c.l.b16 %v1816
        %v1888 = vunpack.c.l.b16 %v1817
        %v1889 = vunpack.c.l.b16 %v1818
        %v1890 = vunpack.c.l.b16 %v1819
        %v1891 = vunpack.c.l.b16 %v1820
        %v1892 = vunpack.c.l.b16 %v1821
        %v1893 = vpack.c.b16 %v1862, %v1861
        %v1894 = vpack.c.b16 %v1864, %v1863
        %v1895 = vpack.c.b16 %v1866, %v1865
        %v1896 = vpack.c.b16 %v1868, %v1867
        %v1897 = vpack.c.b16 %v1870, %v1869
        %v1898 = vpack.c.b16 %v1872, %v1871
        %v1899 = vpack.c.b16 %v1874, %v1873
        %v1900 = vpack.c.b16 %v1876, %v1875
        %v1901 = vpack.c.b16 %v1878, %v1877
        %v1902 = vpack.c.b16 %v1880, %v1879
        %v1903 = vpack.c.b16 %v1882, %v1881
        %v1904 = vpack.c.b16 %v1884, %v1883
        %v1905 = vpack.c.b16 %v1886, %v1885
        %v1906 = vpack.c.b16 %v1888, %v1887
        %v1907 = vpack.c.b16 %v1890, %v1889
        %v1908 = vpack.c.b16 %v1892, %v1891
        %1925 = vmatprep.subr.bf16.mxu0 0
        %1926 = vmatpush1.bf16.msra.mxu0 %v1900
        %1927 = vmatprep.subr.bf16.mxu0 0
        %1928 = vmatpush1.bf16.msra.mxu0 %v1899
        %1929 = vmatprep.subr.bf16.mxu0 0
        %1930 = vmatpush1.bf16.msra.mxu0 %v1898
        %1931 = vmatprep.subr.bf16.mxu0 0
        %1932 = vmatpush1.bf16.msra.mxu0 %v1897
        %1933 = vmatprep.subr.bf16.mxu0 0
        %1934 = vmatpush1.bf16.msra.mxu0 %v1896
        %1935 = vmatprep.subr.bf16.mxu0 0
        %1936 = vmatpush1.bf16.msra.mxu0 %v1895
        %1937 = vmatprep.subr.bf16.mxu0 0
        %1938 = vmatpush1.bf16.msra.mxu0 %v1894
        %1939 = vmatprep.subr.bf16.mxu0 0
        %1940 = vmatpush1.bf16.msra.mxu0 %v1893
        %1941 = vmatprep.subr.bf16.mxu0 0
        %1942 = vmatpush2.bf16.msra.mxu0 %v1908
        %1943 = vmatprep.subr.bf16.mxu0 0
        %1944 = vmatpush2.bf16.msra.mxu0 %v1907
        %1945 = vmatprep.subr.bf16.mxu0 0
        %1946 = vmatpush2.bf16.msra.mxu0 %v1906
        %1947 = vmatprep.subr.bf16.mxu0 0
        %1948 = vmatpush2.bf16.msra.mxu0 %v1905
        %1949 = vmatprep.subr.bf16.mxu0 0
        %1950 = vmatpush2.bf16.msra.mxu0 %v1904
        %1951 = vmatprep.subr.bf16.mxu0 0
        %1952 = vmatpush2.bf16.msra.mxu0 %v1903
        %1953 = vmatprep.subr.bf16.mxu0 0
        %1954 = vmatpush2.bf16.msra.mxu0 %v1902
        %1955 = vmatprep.subr.bf16.mxu0 0
        %1956 = vmatpush2.bf16.msra.mxu0 %v1901
        %1957 = vmatprep.mubr.bf16.mxu0 %v1789
        %1958 = vmatmul.mubr.bf16.gmra.mxu0 %v1788
        %v1959 = vpop.f32.mrf.mxu0
        %v1960 = vadd.f32 %v1827, %v1959
        %v1961 = vpop.f32.mrf.mxu0
        %v1962 = vpop.f32.mrf.mxu0
        %v1963 = vadd.f32 %v1827, %v1962
        %v1964 = vpop.f32.mrf.mxu0
        %1965 = vdwg.mxu0
        %v1966 = vadd.f32 %v1960, %v1598
        %v1967 = vadd.f32 %v1963, %v1599
        %v1968 = vld [vmem:[%s14] sm:$0x1]
        %v1969 = vld [vmem:[%s15] sm:$0x1]
        %1970 = vadd.xlane.f32.xlu0 %v1966
        %v1971 = vpop.xlane.xlu0 %1970
        %1972 = vadd.xlane.f32.xlu0 %v1967
        %v1973 = vpop.xlane.xlu0 %1972
        %v1974 = vmul.f32 %v1971, %v657
        %v1975 = vmul.f32 %v1973, %v657
        %v1976 = vsub.f32 %v1966, %v1974
        %v1977 = vsub.f32 %v1967, %v1975
        %v1978 = vmul.f32 %v1976, %v1976
        %v1979 = vmul.f32 %v1977, %v1977
        %1980 = vadd.xlane.f32.xlu0 %v1978
        %v1981 = vpop.xlane.xlu0 %1980
        %1982 = vadd.xlane.f32.xlu0 %v1979
        %v1983 = vpop.xlane.xlu0 %1982
        %v1984 = vmul.f32 %v1981, %v657
        %v1985 = vmul.f32 %v1983, %v657
        %v1986 = vadd.f32 %v1984, 1e-12
        %v1987 = vadd.f32 %v1985, 1e-12
        %v1988 = vrsqrt.pop %v1986
        %v1989 = vrsqrt.pop %v1987
        %v1990 = vmul.f32 %v1976, %v1988
        %v1991 = vmul.f32 %v1977, %v1989
        %v1993 = vlaneseq
        %v1994 = vshrl.u32 %v1993, 7
        %v1995 = vsub.s32 0, %v1994
        %v1996 = vrot.slane %v1968, %v1995
        %v1998 = vmul.f32 %v1990, %v1996
        %v1999 = vmul.f32 %v1991, %v1996
        %v2001 = vlaneseq
        %v2002 = vshrl.u32 %v2001, 7
        %v2003 = vsub.s32 0, %v2002
        %v2004 = vrot.slane %v1969, %v2003
        %v2006 = vadd.f32 %v1998, %v2004
        %v2007 = vadd.f32 %v1999, %v2004
        %v2008 = vpack.c.bf16 %v2007, %v2006
        %v2010 = vunpack.c.l.b16 %v2008
        %v2011 = vunpack.c.h.b16 %v2008
        %v2012 = vpack.c.b16 %v2010, %v2010
        %v2013 = vpack.c.b16 %v2011, %v2011
        %2016 = vst [vmem:[%s643] sm:$0xf] %v2012
        %2017 = vst [vmem:[%s643 + $0x4] sm:$0xf] %v2013
        %s2018 = sand.u32 %s392, 1
        %s2019 = scalar_lea.sflag [#allocation4], %s2018
        %s2020 = sand.u32 %s392, 1
        %s2021 = smul.addr %s2020, 8
        %s2022 = scalar_lea.vmem [#allocation14], %s2021
        // Predicated region
        $region113: #{tpu_custom_call.1} parent=83 // pred_check
          %p2023 = pneg %p402
        $region114: #{tpu_custom_call.1} parent=83 // pred_check_branch
          %2025 = sbr.rel (%p2023) target = $region116
        $region115: #{tpu_custom_call.1} parent=83 // pred_region
          %s2026 = smul.u32 2, %s38
          %s2028 = ssub.s32 128, 128
          %2029 = vsyncadd %s2019, %s2028
          %s2030 = smul.addr %s2026, 64
          %s2031 = scalar_lea.hbm %s16, %s2030
          %s2032 = sshll.u32 %s2022, 4
          %s2033 = int_to_ptr.vmem [resolvable:$true] %s2032
          %2038 = dma.vmem_to_hbm [thread:$0]  %s2033, 128, %s2031, %s2019, 64, 64, 4
        $region116: #{tpu_custom_call.1} parent=83 // pred_fallthru
          _
      $region84: #{tpu_custom_call.1} parent=5 // pred_fallthru
        _
      %p2039 = scmp.le.s32.totalorder 2, %s33
      // Predicated region
      $region117: #{tpu_custom_call.1} parent=5 // pred_check
        %p2040 = pneg %p2039
      $region118: #{tpu_custom_call.1} parent=5 // pred_check_branch
        %2042 = sbr.rel (%p2040) target = $region120
      $region119: #{tpu_custom_call.1} parent=5 // pred_region
        %s2043 = ssub.s32 %s33, 2
        // Predicated region
        $region121: #{tpu_custom_call.1} parent=119 // pred_check
          %p2044 = pneg %p408
        $region122: #{tpu_custom_call.1} parent=119 // pred_check_branch
          %2046 = sbr.rel (%p2044) target = $region124
        $region123: #{tpu_custom_call.1} parent=119 // pred_region
          %s2047 = sand.u32 %s393, 1
          %s2048 = scalar_lea.sflag [#allocation4], %s2047
          %s2049 = sand.u32 %s393, 1
          %s2050 = smul.addr %s2049, 8
          %s2051 = scalar_lea.vmem [#allocation14], %s2050
          %2052 = dma.done %s2048, 128
        $region124: #{tpu_custom_call.1} parent=119 // pred_fallthru
          _
      $region120: #{tpu_custom_call.1} parent=5 // pred_fallthru
        _
    $region6: #{tpu_custom_call.1} parent=1 // loop_footer
      %s37 = sadd.s32 1, %s33
    $region7: #{tpu_custom_call.1} parent=1 // loop_footer_branch
      %32 = sbr.rel target = $region3
    $region8: #{tpu_custom_call.1} parent=1 // loop_exit
      _
    %2053 = vsyncpa [#allocation3], 1
    %s2054 = scalar_lea.sflag [#allocation3], 1
    %2055 = vsyncpa %s2054, 1
    %2056 = vsyncpa [#allocation6], 1
    %s2057 = scalar_lea.sflag [#allocation6], 1
    %2058 = vsyncpa %s2057, 1
    %2059 = vsyncpa [#allocation9], 1
    %2060 = vsyncpa [#allocation12], 1
    %2061 = vsyncpa [#allocation4], 1
    %s2062 = scalar_lea.sflag [#allocation4], 1
    %2063 = vsyncpa %s2062, 1

</llo_original>
